<compile_context>
chip_gen: v6e
topology: v6e:2x2x1
jax: 0.10.0
libtpu: 0.0.40
codegen_flags: <defaults>
</compile_context>

<pallas_src>
import functools

import jax
import jax.numpy as jnp
from jax.experimental import pallas as pl
from jax.experimental.pallas import tpu as pltpu


LATENT_SIZE = 32


def _round_up(a, b):
    return (a + b - 1) // b * b


# ----------------------------------------------------------------------------
# Pallas kernels
# ----------------------------------------------------------------------------
def _matmul_kernel(x_ref, pb_ref, w_ref, ob_ref, o_ref, *,
                   use_pre_bias, pre_relu, post_relu):
    # Optional f32 pre-activation (previous layer's bias + ReLU), bf16 MXU
    # operands, f32 accumulation, f32 post-bias (+ optional ReLU), cast store.
    x = x_ref[...]
    if use_pre_bias or pre_relu:
        x = x.astype(jnp.float32)
        if use_pre_bias:
            x = x + pb_ref[...]
        if pre_relu:
            x = jnp.maximum(x, 0.0)
    acc = jnp.dot(x.astype(jnp.bfloat16), w_ref[...],
                  preferred_element_type=jnp.float32)
    acc = acc + ob_ref[...]
    if post_relu:
        acc = jnp.maximum(acc, 0.0)
    o_ref[...] = acc.astype(o_ref.dtype)


def pallas_matmul(x, w_bf16, *, pre_bias=None, pre_relu=False, post_bias=None,
                  post_relu=False, out_dtype=jnp.bfloat16, tm_max=512):
    """out = act_post(act_pre(x + pre_bias) @ w + post_bias).

    x: (M, K) f32/bf16, w: (K, N) bf16.  N is never tiled (full-width block),
    so it need not be a multiple of 128 (lane-masked store when it isn't).
    """
    M, K = x.shape
    K2, N = w_bf16.shape
    assert K == K2

    use_pre_bias = pre_bias is not None
    if pre_bias is None:
        pre_bias = jnp.zeros((K,), jnp.float32)
    if post_bias is None:
        post_bias = jnp.zeros((N,), jnp.float32)

    # M tiling: single block for small M, else 512-row tiles.  Per-step
    # working set (x + w + bf16 out, double-buffered) stays well under the
    # 32 MiB scoped VMEM limit on v5e/v6e/v7x.
    Mp = _round_up(M, 8)
    if Mp <= tm_max:
        tm = Mp
    else:
        tm = tm_max
        Mp = _round_up(M, tm)
    if Mp != M:
        x = jnp.pad(x, ((0, Mp - M), (0, 0)))

    out = pl.pallas_call(
        functools.partial(_matmul_kernel, use_pre_bias=use_pre_bias,
                          pre_relu=pre_relu, post_relu=post_relu),
        out_shape=jax.ShapeDtypeStruct((Mp, N), out_dtype),
        grid=(Mp // tm,),
        in_specs=[
            pl.BlockSpec((tm, K), lambda i: (i, 0)),
            pl.BlockSpec((1, K), lambda i: (0, 0)),
            pl.BlockSpec((K, N), lambda i: (0, 0)),
            pl.BlockSpec((1, N), lambda i: (0, 0)),
        ],
        out_specs=pl.BlockSpec((tm, N), lambda i: (i, 0)),
        compiler_params=pltpu.CompilerParams(
            dimension_semantics=("parallel",),
            vmem_limit_bytes=32 * 1024 * 1024),
    )(x,
      pre_bias.reshape(1, K).astype(jnp.float32),
      w_bf16,
      post_bias.reshape(1, N).astype(jnp.float32))
    return out[:M]


def _bias_sigmoid_kernel(x_ref, b_ref, o_ref):
    z = x_ref[...].astype(jnp.float32) + b_ref[...]
    o_ref[...] = 1.0 / (1.0 + jnp.exp(-z))


def pallas_bias_sigmoid(x, b, *, tm_max=512):
    """sigmoid(x + b) elementwise, tiled over rows.  x:(M,N), b scalar."""
    M, N = x.shape
    Mp = _round_up(M, 8)
    if Mp <= tm_max:
        tm = Mp
    else:
        tm = tm_max
        Mp = _round_up(M, tm)
    if Mp != M:
        x = jnp.pad(x, ((0, Mp - M), (0, 0)))
    out = pl.pallas_call(
        _bias_sigmoid_kernel,
        out_shape=jax.ShapeDtypeStruct((Mp, N), jnp.float32),
        grid=(Mp // tm,),
        in_specs=[pl.BlockSpec((tm, N), lambda i: (i, 0)),
                  pl.BlockSpec((1, 1), lambda i: (0, 0))],
        out_specs=pl.BlockSpec((tm, N), lambda i: (i, 0)),
        compiler_params=pltpu.CompilerParams(
            dimension_semantics=("parallel",),
            vmem_limit_bytes=32 * 1024 * 1024),
    )(x, jnp.reshape(b, (1, 1)).astype(jnp.float32))
    return out[:M]


# ----------------------------------------------------------------------------
# col2im overlap-add (transposed-conv output assembly), XLA glue.
# TODO(synk): the C2/C3 overlap-add stays in XLA (contiguous parity
# slice-adds, f32 accumulation); fusing it as an in-kernel epilogue would
# need a strided scatter of the output tile with no clean Mosaic lowering.
# ----------------------------------------------------------------------------
def col2im(y, B, H, W, KH, KW, Cout, stride, pad):
    """y: (B*H*W, KH*KW*Cout) bf16/f32, columns ordered (kh, kw, co).

    Returns the NHWC transposed-conv output (B, OH, OW, Cout) in f32 with
    OH = (H-1)*stride - 2*pad + KH.  Parity decomposition -> every update is
    a contiguous slice-add; accumulation is in f32 even for bf16 inputs.
    """
    assert KH % stride == 0 and KW % stride == 0
    OHf = (H - 1) * stride + KH
    OWf = (W - 1) * stride + KW
    y = y.astype(jnp.float32).reshape(B, H, W, KH, KW, Cout)
    out = jnp.zeros((B, OHf // stride, stride, OWf // stride, stride, Cout),
                    jnp.float32)
    for kh in range(KH):
        ph, rh = kh % stride, kh // stride
        for kw in range(KW):
            pw, rw = kw % stride, kw // stride
            out = out.at[:, rh:rh + H, ph, rw:rw + W, pw, :].add(
                y[:, :, :, kh, kw, :])
    out = out.reshape(B, OHf, OWf, Cout)
    OH, OW = OHf - 2 * pad, OWf - 2 * pad
    return out[:, pad:pad + OH, pad:pad + OW, :]


# ----------------------------------------------------------------------------
# Decoder parameters + forward
# ----------------------------------------------------------------------------
def init_params(key):
    ks = jax.random.split(key, 8)

    def u(k, shape, fan_in):
        bound = 1.0 / (fan_in ** 0.5)
        return jax.random.uniform(k, shape, jnp.float32, -bound, bound)

    p = {}
    # L1: Linear(latent, 4*4*128)   (PyTorch layout: weight (out, in))
    p["l1_w"] = u(ks[0], (4 * 4 * 128, LATENT_SIZE), LATENT_SIZE)
    p["l1_b"] = u(ks[1], (4 * 4 * 128,), LATENT_SIZE)
    # C1: ConvTranspose2d(128, 64, k=2, s=2, p=1); weight (Cin, Cout, KH, KW)
    p["c1_w"] = u(ks[2], (128, 64, 2, 2), 64 * 4)
    p["c1_b"] = u(ks[3], (64,), 64 * 4)
    # C2: ConvTranspose2d(64, 32, k=4, s=2, p=1)
    p["c2_w"] = u(ks[4], (64, 32, 4, 4), 32 * 16)
    p["c2_b"] = u(ks[5], (32,), 32 * 16)
    # C3: ConvTranspose2d(32, 1, k=6, s=2, p=0)
    p["c3_w"] = u(ks[6], (32, 1, 6, 6), 1 * 36)
    p["c3_b"] = u(ks[7], (1,), 1 * 36)
    return p


def prepare_params(p):
    """One-time layout prep.

    * L1 + View + C1 (k=2, s=2, p=1) fold into one (latent -> 6*6*64) affine
      map emitting NHWC a1 directly: kernel == stride means no overlap, and
      every surviving output pixel (after the pad=1 crop) gets exactly one
      kernel tap, so the fold (including both biases) is exact.
    * C2/C3 transposed-conv weights flatten to (Cin, KH*KW*Cout) with
      (kh, kw, co)-ordered columns for the input-side matmul.
    * MXU operands in bf16, biases in f32.
    """
    q = {}
    l1_w = p["l1_w"].astype(jnp.float32)          # (2048, latent), rows (c,h,w)
    l1_b = p["l1_b"].astype(jnp.float32)
    c1_w = p["c1_w"].astype(jnp.float32)          # (128, 64, 2, 2)
    c1_b = p["c1_b"].astype(jnp.float32)
    l1_w_r = l1_w.reshape(128, 4, 4, LATENT_SIZE)
    l1_b_r = l1_b.reshape(128, 4, 4)
    w_cols, b_cols = [], []
    for oh in range(6):
        hh, kh = (oh + 1) // 2, (oh + 1) % 2      # oh = 2*hh + kh - pad
        for ow in range(6):
            ww, kw = (ow + 1) // 2, (ow + 1) % 2
            wk = c1_w[:, :, kh, kw]               # (128, 64)
            w_cols.append(l1_w_r[:, hh, ww, :].T @ wk)        # (latent, 64)
            b_cols.append(l1_b_r[:, hh, ww] @ wk + c1_b)      # (64,)
    q["dec1_w"] = jnp.concatenate(w_cols, axis=1).astype(jnp.bfloat16)  # (32,2304)
    q["dec1_b"] = jnp.concatenate(b_cols, axis=0)                       # (2304,)

    def conv_t_flat(w):  # (Cin, Cout, KH, KW) -> (Cin, KH*KW*Cout)
        cin, cout, kh_, kw_ = w.shape
        return jnp.transpose(w, (0, 2, 3, 1)).reshape(
            cin, kh_ * kw_ * cout).astype(jnp.bfloat16)

    q["c2_w"] = conv_t_flat(p["c2_w"]); q["c2_b"] = p["c2_b"]
    q["c3_w"] = conv_t_flat(p["c3_w"]); q["c3_b"] = p["c3_b"]
    return q


def decoder_forward(prepared, z):
    """Decoder.forward(z) -> (B, 1, 28, 28)."""
    B = z.shape[0]

    # Fused L1 + View + C1 (+both biases) + ReLU: one matmul from z straight
    # to the NHWC C1 activation (B, 6, 6, 64), stored bf16 as (B, 2304).
    a1 = pallas_matmul(z, prepared["dec1_w"], post_bias=prepared["dec1_b"],
                       post_relu=True)

    # C2: ConvTranspose2d(64,32,k=4,s=2,p=1) as input-side matmul + col2im.
    # Its bias + ReLU are folded into C3's matmul as an f32 pre-activation.
    y2 = pallas_matmul(a1.reshape(B * 36, 64), prepared["c2_w"])
    a2 = col2im(y2, B, 6, 6, 4, 4, 32, stride=2, pad=1)       # (B,12,12,32)
    a2 = a2.astype(jnp.bfloat16)

    # C3: ConvTranspose2d(32,1,k=6,s=2,p=0); unpadded lane width (36) bf16 out.
    y3 = pallas_matmul(a2.reshape(B * 144, 32), prepared["c3_w"],
                       pre_bias=prepared["c2_b"], pre_relu=True)
    a3 = col2im(y3, B, 12, 12, 6, 6, 1, stride=2, pad=0)      # (B,28,28,1) f32

    # Final bias + sigmoid, lane-dense over the 784 pixels, batch-tiled.
    out = pallas_bias_sigmoid(a3.reshape(B, 28 * 28).astype(jnp.bfloat16),
                              prepared["c3_b"])
    return jnp.transpose(out.reshape(B, 28, 28, 1), (0, 3, 1, 2))  # NCHW


# ----------------------------------------------------------------------------
# Pure-XLA reference (PyTorch-layout weights, f32) for a correctness check
# ----------------------------------------------------------------------------
def _ref_conv_transpose(x, w, b, stride, pad):
    kh, kw = w.shape[2], w.shape[3]
    wc = jnp.transpose(jnp.flip(w, (2, 3)), (1, 0, 2, 3))  # (Cout,Cin,KH,KW)
    y = jax.lax.conv_general_dilated(
        x, wc, window_strides=(1, 1),
        padding=[(kh - 1 - pad, kh - 1 - pad), (kw - 1 - pad, kw - 1 - pad)],
        lhs_dilation=(stride, stride),
        dimension_numbers=("NCHW", "OIHW", "NCHW"))
    return y + b[None, :, None, None]


def decoder_reference(p, z):
    h = z @ p["l1_w"].T + p["l1_b"]
    x = h.reshape(-1, 128, 4, 4)
    x = jax.nn.relu(_ref_conv_transpose(x, p["c1_w"], p["c1_b"], 2, 1))
    x = jax.nn.relu(_ref_conv_transpose(x, p["c2_w"], p["c2_b"], 2, 1))
    x = _ref_conv_transpose(x, p["c3_w"], p["c3_b"], 2, 0)
    return jax.nn.sigmoid(x)


if __name__ == "__main__":
    key = jax.random.PRNGKey(0)
    kp, kz = jax.random.split(key)

    params = init_params(kp)
    prepared = prepare_params(params)
    z = jax.random.normal(kz, (2, LATENT_SIZE), dtype=jnp.float32)

    out = jax.jit(decoder_forward)(prepared, z)
    jax.block_until_ready(out)
    assert out.shape == (2, 1, 28, 28)

    ref = decoder_reference(params, z)
    err = float(jnp.max(jnp.abs(out - ref)))
    assert err < 3e-2, f"max abs error vs reference: {err}"

    print("KERNEL_OK")
</pallas_src>

<mosaic_0001>
module attributes {stable_mosaic.version = 11 : i64} {
  func.func @_matmul_kernel(%arg0: i32, %arg1: memref<8x32xf32, #tpu.memory_space<vmem>>, %arg2: memref<1x32xf32, #tpu.memory_space<vmem>>, %arg3: memref<32x2304xbf16, #tpu.memory_space<vmem>>, %arg4: memref<1x2304xf32, #tpu.memory_space<vmem>>, %arg5: memref<8x2304xbf16, #tpu.memory_space<vmem>>) attributes {dimension_semantics = [#tpu.dimension_semantics<parallel>], iteration_bounds = array<i64: 1>, scalar_prefetch = 0 : i64, scratch_operands = 0 : i64, tpu.core_type = #tpu.core_type<tc>, window_params = [{transform_indices = @transform_0, window_bounds = array<i64: 8, 32>}, {pipeline_mode = #tpu.pipeline_mode<synchronous>, transform_indices = @transform_1, window_bounds = array<i64: 1, 32>}, {pipeline_mode = #tpu.pipeline_mode<synchronous>, transform_indices = @transform_2, window_bounds = array<i64: 32, 2304>}, {pipeline_mode = #tpu.pipeline_mode<synchronous>, transform_indices = @transform_3, window_bounds = array<i64: 1, 2304>}, {transform_indices = @transform_4, window_bounds = array<i64: 8, 2304>}]} {
    %c0 = arith.constant 0 : index
    %c0_0 = arith.constant 0 : index
    %0 = vector.load %arg1[%c0, %c0_0] : memref<8x32xf32, #tpu.memory_space<vmem>>, vector<8x32xf32>
    %1 = arith.truncf %0 : vector<8x32xf32> to vector<8x32xbf16>
    %c0_1 = arith.constant 0 : index
    %c0_2 = arith.constant 0 : index
    %2 = vector.load %arg3[%c0_1, %c0_2] : memref<32x2304xbf16, #tpu.memory_space<vmem>>, vector<32x2304xbf16>
    %cst = arith.constant dense<0.000000e+00> : vector<8x2304xf32>
    %3 = tpu.matmul %1, %2, %cst {dimension_numbers = #tpu.dot_dimension_numbers<[1], [0], [0], [1], [0, 0, 1, 1], [], []>} : vector<8x32xbf16>, vector<32x2304xbf16>, vector<8x2304xf32> -> vector<8x2304xf32>
    %c0_3 = arith.constant 0 : index
    %c0_4 = arith.constant 0 : index
    %4 = vector.load %arg4[%c0_3, %c0_4] : memref<1x2304xf32, #tpu.memory_space<vmem>>, vector<1x2304xf32>
    %5 = vector.broadcast %4 : vector<1x2304xf32> to vector<8x2304xf32>
    %6 = arith.addf %3, %5 : vector<8x2304xf32>
    %cst_5 = arith.constant 0.000000e+00 : f32
    %7 = vector.broadcast %cst_5 : f32 to vector<8x2304xf32>
    %8 = arith.maximumf %6, %7 : vector<8x2304xf32>
    %9 = arith.truncf %8 : vector<8x2304xf32> to vector<8x2304xbf16>
    %c0_6 = arith.constant 0 : index
    %c0_7 = arith.constant 0 : index
    %10 = vector.load %arg5[%c0_6, %c0_7] : memref<8x2304xbf16, #tpu.memory_space<vmem>>, vector<8x2304xbf16>
    tpu.vector_store %arg5[%c0_6, %c0_7], %9 {strides = array<i32>} : memref<8x2304xbf16, #tpu.memory_space<vmem>>, vector<8x2304xbf16>,
    return
  }
  func.func @transform_0(%arg0: i32) -> (i32, i32) {
    %c0_i32 = arith.constant 0 : i32
    %c0_i32_0 = arith.constant 0 : i32
    return %arg0, %c0_i32 : i32, i32
  }
  func.func @transform_1(%arg0: i32) -> (i32, i32) {
    %c0_i32 = arith.constant 0 : i32
    %c0_i32_0 = arith.constant 0 : i32
    %c0_i32_1 = arith.constant 0 : i32
    return %c0_i32, %c0_i32_0 : i32, i32
  }
  func.func @transform_2(%arg0: i32) -> (i32, i32) {
    %c0_i32 = arith.constant 0 : i32
    %c0_i32_0 = arith.constant 0 : i32
    %c0_i32_1 = arith.constant 0 : i32
    return %c0_i32, %c0_i32_0 : i32, i32
  }
  func.func @transform_3(%arg0: i32) -> (i32, i32) {
    %c0_i32 = arith.constant 0 : i32
    %c0_i32_0 = arith.constant 0 : i32
    %c0_i32_1 = arith.constant 0 : i32
    return %c0_i32, %c0_i32_0 : i32, i32
  }
  func.func @transform_4(%arg0: i32) -> (i32, i32) {
    %c0_i32 = arith.constant 0 : i32
    %c0_i32_0 = arith.constant 0 : i32
    return %arg0, %c0_i32 : i32, i32
  }
}

module attributes {stable_mosaic.version = 11 : i64} {
  func.func @_matmul_kernel(%arg0: i32, %arg1: memref<72x64xbf16, #tpu.memory_space<vmem>>, %arg2: memref<1x64xf32, #tpu.memory_space<vmem>>, %arg3: memref<64x512xbf16, #tpu.memory_space<vmem>>, %arg4: memref<1x512xf32, #tpu.memory_space<vmem>>, %arg5: memref<72x512xbf16, #tpu.memory_space<vmem>>) attributes {dimension_semantics = [#tpu.dimension_semantics<parallel>], iteration_bounds = array<i64: 1>, scalar_prefetch = 0 : i64, scratch_operands = 0 : i64, tpu.core_type = #tpu.core_type<tc>, window_params = [{transform_indices = @transform_0, window_bounds = array<i64: 72, 64>}, {pipeline_mode = #tpu.pipeline_mode<synchronous>, transform_indices = @transform_1, window_bounds = array<i64: 1, 64>}, {pipeline_mode = #tpu.pipeline_mode<synchronous>, transform_indices = @transform_2, window_bounds = array<i64: 64, 512>}, {pipeline_mode = #tpu.pipeline_mode<synchronous>, transform_indices = @transform_3, window_bounds = array<i64: 1, 512>}, {transform_indices = @transform_4, window_bounds = array<i64: 72, 512>}]} {
    %c0 = arith.constant 0 : index
    %c0_0 = arith.constant 0 : index
    %0 = vector.load %arg1[%c0, %c0_0] : memref<72x64xbf16, #tpu.memory_space<vmem>>, vector<72x64xbf16>
    %c0_1 = arith.constant 0 : index
    %c0_2 = arith.constant 0 : index
    %1 = vector.load %arg3[%c0_1, %c0_2] : memref<64x512xbf16, #tpu.memory_space<vmem>>, vector<64x512xbf16>
    %cst = arith.constant dense<0.000000e+00> : vector<72x512xf32>
    %2 = tpu.matmul %0, %1, %cst {dimension_numbers = #tpu.dot_dimension_numbers<[1], [0], [0], [1], [0, 0, 1, 1], [], []>} : vector<72x64xbf16>, vector<64x512xbf16>, vector<72x512xf32> -> vector<72x512xf32>
    %c0_3 = arith.constant 0 : index
    %c0_4 = arith.constant 0 : index
    %3 = vector.load %arg4[%c0_3, %c0_4] : memref<1x512xf32, #tpu.memory_space<vmem>>, vector<1x512xf32>
    %4 = vector.broadcast %3 : vector<1x512xf32> to vector<72x512xf32>
    %5 = arith.addf %2, %4 : vector<72x512xf32>
    %6 = arith.truncf %5 : vector<72x512xf32> to vector<72x512xbf16>
    %c0_5 = arith.constant 0 : index
    %c0_6 = arith.constant 0 : index
    %7 = vector.load %arg5[%c0_5, %c0_6] : memref<72x512xbf16, #tpu.memory_space<vmem>>, vector<72x512xbf16>
    tpu.vector_store %arg5[%c0_5, %c0_6], %6 {strides = array<i32>} : memref<72x512xbf16, #tpu.memory_space<vmem>>, vector<72x512xbf16>,
    return
  }
  func.func @transform_0(%arg0: i32) -> (i32, i32) {
    %c0_i32 = arith.constant 0 : i32
    %c0_i32_0 = arith.constant 0 : i32
    return %arg0, %c0_i32 : i32, i32
  }
  func.func @transform_1(%arg0: i32) -> (i32, i32) {
    %c0_i32 = arith.constant 0 : i32
    %c0_i32_0 = arith.constant 0 : i32
    %c0_i32_1 = arith.constant 0 : i32
    return %c0_i32, %c0_i32_0 : i32, i32
  }
  func.func @transform_2(%arg0: i32) -> (i32, i32) {
    %c0_i32 = arith.constant 0 : i32
    %c0_i32_0 = arith.constant 0 : i32
    %c0_i32_1 = arith.constant 0 : i32
    return %c0_i32, %c0_i32_0 : i32, i32
  }
  func.func @transform_3(%arg0: i32) -> (i32, i32) {
    %c0_i32 = arith.constant 0 : i32
    %c0_i32_0 = arith.constant 0 : i32
    %c0_i32_1 = arith.constant 0 : i32
    return %c0_i32, %c0_i32_0 : i32, i32
  }
  func.func @transform_4(%arg0: i32) -> (i32, i32) {
    %c0_i32 = arith.constant 0 : i32
    %c0_i32_0 = arith.constant 0 : i32
    return %arg0, %c0_i32 : i32, i32
  }
}

module attributes {stable_mosaic.version = 11 : i64} {
  func.func @_matmul_kernel(%arg0: i32, %arg1: memref<288x32xbf16, #tpu.memory_space<vmem>>, %arg2: memref<1x32xf32, #tpu.memory_space<vmem>>, %arg3: memref<32x36xbf16, #tpu.memory_space<vmem>>, %arg4: memref<1x36xf32, #tpu.memory_space<vmem>>, %arg5: memref<288x36xbf16, #tpu.memory_space<vmem>>) attributes {dimension_semantics = [#tpu.dimension_semantics<parallel>], iteration_bounds = array<i64: 1>, scalar_prefetch = 0 : i64, scratch_operands = 0 : i64, tpu.core_type = #tpu.core_type<tc>, window_params = [{transform_indices = @transform_0, window_bounds = array<i64: 288, 32>}, {pipeline_mode = #tpu.pipeline_mode<synchronous>, transform_indices = @transform_1, window_bounds = array<i64: 1, 32>}, {pipeline_mode = #tpu.pipeline_mode<synchronous>, transform_indices = @transform_2, window_bounds = array<i64: 32, 36>}, {pipeline_mode = #tpu.pipeline_mode<synchronous>, transform_indices = @transform_3, window_bounds = array<i64: 1, 36>}, {transform_indices = @transform_4, window_bounds = array<i64: 288, 36>}]} {
    %c0 = arith.constant 0 : index
    %c0_0 = arith.constant 0 : index
    %0 = vector.load %arg1[%c0, %c0_0] : memref<288x32xbf16, #tpu.memory_space<vmem>>, vector<288x32xbf16>
    %1 = arith.extf %0 : vector<288x32xbf16> to vector<288x32xf32>
    %c0_1 = arith.constant 0 : index
    %c0_2 = arith.constant 0 : index
    %2 = vector.load %arg2[%c0_1, %c0_2] : memref<1x32xf32, #tpu.memory_space<vmem>>, vector<1x32xf32>
    %3 = vector.broadcast %2 : vector<1x32xf32> to vector<288x32xf32>
    %4 = arith.addf %1, %3 : vector<288x32xf32>
    %cst = arith.constant 0.000000e+00 : f32
    %5 = vector.broadcast %cst : f32 to vector<288x32xf32>
    %6 = arith.maximumf %4, %5 : vector<288x32xf32>
    %7 = arith.truncf %6 : vector<288x32xf32> to vector<288x32xbf16>
    %c0_3 = arith.constant 0 : index
    %c0_4 = arith.constant 0 : index
    %8 = vector.load %arg3[%c0_3, %c0_4] : memref<32x36xbf16, #tpu.memory_space<vmem>>, vector<32x36xbf16>
    %cst_5 = arith.constant dense<0.000000e+00> : vector<288x36xf32>
    %9 = tpu.matmul %7, %8, %cst_5 {dimension_numbers = #tpu.dot_dimension_numbers<[1], [0], [0], [1], [0, 0, 1, 1], [], []>} : vector<288x32xbf16>, vector<32x36xbf16>, vector<288x36xf32> -> vector<288x36xf32>
    %c0_6 = arith.constant 0 : index
    %c0_7 = arith.constant 0 : index
    %10 = vector.load %arg4[%c0_6, %c0_7] : memref<1x36xf32, #tpu.memory_space<vmem>>, vector<1x36xf32>
    %11 = vector.broadcast %10 : vector<1x36xf32> to vector<288x36xf32>
    %12 = arith.addf %9, %11 : vector<288x36xf32>
    %13 = arith.truncf %12 : vector<288x36xf32> to vector<288x36xbf16>
    %c0_8 = arith.constant 0 : index
    %c0_9 = arith.constant 0 : index
    %14 = vector.load %arg5[%c0_8, %c0_9] : memref<288x36xbf16, #tpu.memory_space<vmem>>, vector<288x36xbf16>
    tpu.vector_store %arg5[%c0_8, %c0_9], %13 {strides = array<i32>} : memref<288x36xbf16, #tpu.memory_space<vmem>>, vector<288x36xbf16>,
    return
  }
  func.func @transform_0(%arg0: i32) -> (i32, i32) {
    %c0_i32 = arith.constant 0 : i32
    %c0_i32_0 = arith.constant 0 : i32
    return %arg0, %c0_i32 : i32, i32
  }
  func.func @transform_1(%arg0: i32) -> (i32, i32) {
    %c0_i32 = arith.constant 0 : i32
    %c0_i32_0 = arith.constant 0 : i32
    %c0_i32_1 = arith.constant 0 : i32
    return %c0_i32, %c0_i32_0 : i32, i32
  }
  func.func @transform_2(%arg0: i32) -> (i32, i32) {
    %c0_i32 = arith.constant 0 : i32
    %c0_i32_0 = arith.constant 0 : i32
    %c0_i32_1 = arith.constant 0 : i32
    return %c0_i32, %c0_i32_0 : i32, i32
  }
  func.func @transform_3(%arg0: i32) -> (i32, i32) {
    %c0_i32 = arith.constant 0 : i32
    %c0_i32_0 = arith.constant 0 : i32
    %c0_i32_1 = arith.constant 0 : i32
    return %c0_i32, %c0_i32_0 : i32, i32
  }
  func.func @transform_4(%arg0: i32) -> (i32, i32) {
    %c0_i32 = arith.constant 0 : i32
    %c0_i32_0 = arith.constant 0 : i32
    return %arg0, %c0_i32 : i32, i32
  }
}

module attributes {stable_mosaic.version = 11 : i64} {
  func.func @_bias_sigmoid_kernel(%arg0: i32, %arg1: memref<8x784xbf16, #tpu.memory_space<vmem>>, %arg2: memref<1x1xf32, #tpu.memory_space<vmem>>, %arg3: memref<8x784xf32, #tpu.memory_space<vmem>>) attributes {dimension_semantics = [#tpu.dimension_semantics<parallel>], iteration_bounds = array<i64: 1>, scalar_prefetch = 0 : i64, scratch_operands = 0 : i64, tpu.core_type = #tpu.core_type<tc>, window_params = [{transform_indices = @transform_0, window_bounds = array<i64: 8, 784>}, {pipeline_mode = #tpu.pipeline_mode<synchronous>, transform_indices = @transform_1, window_bounds = array<i64: 1, 1>}, {transform_indices = @transform_2, window_bounds = array<i64: 8, 784>}]} {
    %c0 = arith.constant 0 : index
    %c0_0 = arith.constant 0 : index
    %0 = vector.load %arg1[%c0, %c0_0] : memref<8x784xbf16, #tpu.memory_space<vmem>>, vector<8x784xbf16>
    %1 = arith.extf %0 : vector<8x784xbf16> to vector<8x784xf32>
    %c0_1 = arith.constant 0 : index
    %c0_2 = arith.constant 0 : index
    %2 = vector.load %arg2[%c0_1, %c0_2] : memref<1x1xf32, #tpu.memory_space<vmem>>, vector<1x1xf32>
    %3 = vector.broadcast %2 : vector<1x1xf32> to vector<8x784xf32>
    %4 = arith.addf %1, %3 : vector<8x784xf32>
    %cst = arith.constant 0.000000e+00 : f32
    %5 = vector.broadcast %cst : f32 to vector<8x784xf32>
    %6 = arith.subf %5, %4 : vector<8x784xf32>
    %7 = math.exp %6 : vector<8x784xf32>
    %cst_3 = arith.constant 1.000000e+00 : f32
    %8 = vector.broadcast %cst_3 : f32 to vector<8x784xf32>
    %9 = arith.addf %8, %7 : vector<8x784xf32>
    %cst_4 = arith.constant 1.000000e+00 : f32
    %10 = vector.broadcast %cst_4 : f32 to vector<8x784xf32>
    %11 = arith.divf %10, %9 : vector<8x784xf32>
    %c0_5 = arith.constant 0 : index
    %c0_6 = arith.constant 0 : index
    %12 = vector.load %arg3[%c0_5, %c0_6] : memref<8x784xf32, #tpu.memory_space<vmem>>, vector<8x784xf32>
    tpu.vector_store %arg3[%c0_5, %c0_6], %11 {strides = array<i32>} : memref<8x784xf32, #tpu.memory_space<vmem>>, vector<8x784xf32>,
    return
  }
  func.func @transform_0(%arg0: i32) -> (i32, i32) {
    %c0_i32 = arith.constant 0 : i32
    %c0_i32_0 = arith.constant 0 : i32
    return %arg0, %c0_i32 : i32, i32
  }
  func.func @transform_1(%arg0: i32) -> (i32, i32) {
    %c0_i32 = arith.constant 0 : i32
    %c0_i32_0 = arith.constant 0 : i32
    %c0_i32_1 = arith.constant 0 : i32
    return %c0_i32, %c0_i32_0 : i32, i32
  }
  func.func @transform_2(%arg0: i32) -> (i32, i32) {
    %c0_i32 = arith.constant 0 : i32
    %c0_i32_0 = arith.constant 0 : i32
    return %arg0, %c0_i32 : i32, i32
  }
}

</mosaic_0001>

<llo_original>
// kernel: decoder_forward.5
$region0: #{decoder_forward.5}
  #allocation0 [shape = 'u32[]', space=smem, size = 0x4, offset = 0x4, fixed_abs, tag = 'smem constant byte address 0x4 - core index']
  #allocation1 [shape = 'u32[144,128]{1,0:T(1,128)}', space=vmem, size = 0x12000, scoped, tag = 'internal scratch']
  %s0 = inlined_call_operand.vmem [shape: bf16[72,64], index: 0, kind: input, shape index: {}]
  %s1 = inlined_call_operand.vmem [shape: f32[1,64], index: 1, kind: input, shape index: {}]
  %s2 = inlined_call_operand.vmem [shape: bf16[64,512], index: 2, kind: input, shape index: {}]
  %s3 = inlined_call_operand.vmem [shape: f32[1,512], index: 3, kind: input, shape index: {}]
  %s4 = inlined_call_operand.vmem [shape: bf16[72,512], index: 4, kind: output, shape index: {}]
  %s5 = sld [smem:[#allocation0]]
  $region26: #{decoder_forward.5} parent=0
    _
  %s7 = ssub.s32 1, %s5
  %s8 = scalar_select 0, %s7, %s5
  // Predicated region
  $region2: #{decoder_forward.5} parent=0 // pred_check
    _
  $region3: #{decoder_forward.5} parent=0 // pred_check_branch
    %10 = sbr.rel (0) target = $region5
  $region4: #{decoder_forward.5} parent=0 // pred_region
    _
  $region5: #{decoder_forward.5} parent=0 // pred_fallthru
    _
  // Predicated region
  $region6: #{decoder_forward.5} parent=0 // pred_check
    _
  $region7: #{decoder_forward.5} parent=0 // pred_check_branch
    %12 = sbr.rel (0) target = $region9
  $region8: #{decoder_forward.5} parent=0 // pred_region
    _
  $region9: #{decoder_forward.5} parent=0 // pred_fallthru
    _
  // Predicated region
  $region10: #{decoder_forward.5} parent=0 // pred_check
    _
  $region11: #{decoder_forward.5} parent=0 // pred_check_branch
    %14 = sbr.rel (0) target = $region13
  $region12: #{decoder_forward.5} parent=0 // pred_region
    _
  $region13: #{decoder_forward.5} parent=0 // pred_fallthru
    _
  // Predicated region
  $region14: #{decoder_forward.5} parent=0 // pred_check
    _
  $region15: #{decoder_forward.5} parent=0 // pred_check_branch
    %16 = sbr.rel (0) target = $region17
  $region16: #{decoder_forward.5} parent=0 // pred_region
    _
  $region17: #{decoder_forward.5} parent=0 // pred_fallthru
    _
  %v18 = vld [vmem:[%s0] sm:$0xf]
  %v19 = vld [vmem:[%s0 + $0x4] sm:$0xf]
  %v20 = vld [vmem:[%s0 + $0x8] sm:$0xf]
  %v21 = vld [vmem:[%s0 + $0xc] sm:$0xf]
  %v22 = vld [vmem:[%s0 + $0x10] sm:$0xf]
  %v23 = vld [vmem:[%s0 + $0x14] sm:$0xf]
  %v24 = vld [vmem:[%s0 + $0x18] sm:$0xf]
  %v25 = vld [vmem:[%s0 + $0x1c] sm:$0xf]
  %v26 = vld [vmem:[%s0 + $0x20] sm:$0xf]
  %v27 = vld [vmem:[%s2] sm:$0xff]
  %v28 = vld [vmem:[%s2 + $0x8] sm:$0xff]
  %v29 = vld [vmem:[%s2 + $0x10] sm:$0xff]
  %v30 = vld [vmem:[%s2 + $0x18] sm:$0xff]
  %v31 = vld [vmem:[%s2 + $0x20] sm:$0xff]
  %v32 = vld [vmem:[%s2 + $0x28] sm:$0xff]
  %v33 = vld [vmem:[%s2 + $0x30] sm:$0xff]
  %v34 = vld [vmem:[%s2 + $0x38] sm:$0xff]
  %v35 = vld [vmem:[%s2 + $0x40] sm:$0xff]
  %v36 = vld [vmem:[%s2 + $0x48] sm:$0xff]
  %v37 = vld [vmem:[%s2 + $0x50] sm:$0xff]
  %v38 = vld [vmem:[%s2 + $0x58] sm:$0xff]
  %v39 = vld [vmem:[%s2 + $0x60] sm:$0xff]
  %v40 = vld [vmem:[%s2 + $0x68] sm:$0xff]
  %v41 = vld [vmem:[%s2 + $0x70] sm:$0xff]
  %v42 = vld [vmem:[%s2 + $0x78] sm:$0xff]
  %v43 = vld [vmem:[%s3] sm:$0xf]
  %v45 = vlaneseq
  %v46 = vshrl.u32 %v45, 7
  %v47 = vsub.s32 0, %v46
  %v48 = vrot.slane %v43, %v47
  %v49 = vlaneseq
  %v50 = vshrl.u32 %v49, 7
  %v51 = vsub.s32 1, %v50
  %v52 = vrot.slane %v43, %v51
  %v53 = vlaneseq
  %v54 = vshrl.u32 %v53, 7
  %v55 = vsub.s32 2, %v54
  %v56 = vrot.slane %v43, %v55
  %v57 = vlaneseq
  %v58 = vshrl.u32 %v57, 7
  %v59 = vsub.s32 3, %v58
  %v60 = vrot.slane %v43, %v59
  %v74 = vunpack.c.l.b16 %v18
  %v75 = vunpack.c.l.b16 %v19
  %v76 = vunpack.c.l.b16 %v20
  %v77 = vunpack.c.l.b16 %v21
  %v78 = vunpack.c.l.b16 %v22
  %v79 = vunpack.c.l.b16 %v23
  %v80 = vunpack.c.l.b16 %v24
  %v81 = vunpack.c.l.b16 %v25
  %v82 = vunpack.c.l.b16 %v26
  %v83 = vpack.c.b16 %v75, %v74
  %v84 = vpack.c.b16 %v77, %v76
  %v85 = vpack.c.b16 %v79, %v78
  %v86 = vpack.c.b16 %v81, %v80
  %v87 = vpack.c.b16 %v82, %v82
  %v104 = vunpack.c.l.b16 %v27
  %v105 = vunpack.c.h.b16 %v27
  %v106 = vunpack.c.l.b16 %v28
  %v107 = vunpack.c.h.b16 %v28
  %v108 = vunpack.c.l.b16 %v29
  %v109 = vunpack.c.h.b16 %v29
  %v110 = vunpack.c.l.b16 %v30
  %v111 = vunpack.c.h.b16 %v30
  %v112 = vunpack.c.l.b16 %v31
  %v113 = vunpack.c.h.b16 %v31
  %v114 = vunpack.c.l.b16 %v32
  %v115 = vunpack.c.h.b16 %v32
  %v116 = vunpack.c.l.b16 %v33
  %v117 = vunpack.c.h.b16 %v33
  %v118 = vunpack.c.l.b16 %v34
  %v119 = vunpack.c.h.b16 %v34
  %v120 = vunpack.c.l.b16 %v35
  %v121 = vunpack.c.h.b16 %v35
  %v122 = vunpack.c.l.b16 %v36
  %v123 = vunpack.c.h.b16 %v36
  %v124 = vunpack.c.l.b16 %v37
  %v125 = vunpack.c.h.b16 %v37
  %v126 = vunpack.c.l.b16 %v38
  %v127 = vunpack.c.h.b16 %v38
  %v128 = vunpack.c.l.b16 %v39
  %v129 = vunpack.c.h.b16 %v39
  %v130 = vunpack.c.l.b16 %v40
  %v131 = vunpack.c.h.b16 %v40
  %v132 = vunpack.c.l.b16 %v41
  %v133 = vunpack.c.h.b16 %v41
  %v134 = vunpack.c.l.b16 %v42
  %v135 = vunpack.c.h.b16 %v42
  %v136 = vpack.c.b16 %v108, %v104
  %v137 = vpack.c.b16 %v109, %v105
  %v138 = vpack.c.b16 %v110, %v106
  %v139 = vpack.c.b16 %v111, %v107
  %v140 = vpack.c.b16 %v116, %v112
  %v141 = vpack.c.b16 %v117, %v113
  %v142 = vpack.c.b16 %v118, %v114
  %v143 = vpack.c.b16 %v119, %v115
  %v144 = vpack.c.b16 %v124, %v120
  %v145 = vpack.c.b16 %v125, %v121
  %v146 = vpack.c.b16 %v126, %v122
  %v147 = vpack.c.b16 %v127, %v123
  %v148 = vpack.c.b16 %v132, %v128
  %v149 = vpack.c.b16 %v133, %v129
  %v150 = vpack.c.b16 %v134, %v130
  %v151 = vpack.c.b16 %v135, %v131
  %vm168 = vcmask 523264
  %v170 = vsel %vm168, %v83, 0
  %v173 = vsel %vm168, %v84, 0
  %v176 = vsel %vm168, %v85, 0
  %v179 = vsel %vm168, %v86, 0
  %v182 = vsel %vm168, %v87, 0
  %184 = vmatprep.subr.bf16.mxu0 0
  %185 = vmatpush1.bf16.msra.mxu0 0
  %186 = vmatprep.subr.bf16.mxu0 0
  %187 = vmatpush1.bf16.msra.mxu0 0
  %188 = vmatprep.subr.bf16.mxu0 0
  %189 = vmatpush1.bf16.msra.mxu0 0
  %190 = vmatprep.subr.bf16.mxu0 0
  %191 = vmatpush1.bf16.msra.mxu0 0
  %192 = vmatprep.subr.bf16.mxu0 %v149
  %193 = vmatpush1.bf16.msra.mxu0 %v148
  %194 = vmatprep.subr.bf16.mxu0 %v145
  %195 = vmatpush1.bf16.msra.mxu0 %v144
  %196 = vmatprep.subr.bf16.mxu0 %v141
  %197 = vmatpush1.bf16.msra.mxu0 %v140
  %198 = vmatprep.subr.bf16.mxu0 %v137
  %199 = vmatpush1.bf16.msra.mxu0 %v136
  %200 = vmatprep.subr.bf16.mxu0 0
  %201 = vmatpush2.bf16.msra.mxu0 0
  %202 = vmatprep.subr.bf16.mxu0 0
  %203 = vmatpush2.bf16.msra.mxu0 0
  %204 = vmatprep.subr.bf16.mxu0 0
  %205 = vmatpush2.bf16.msra.mxu0 0
  %206 = vmatprep.subr.bf16.mxu0 0
  %207 = vmatpush2.bf16.msra.mxu0 0
  %208 = vmatprep.subr.bf16.mxu0 0
  %209 = vmatpush2.bf16.msra.mxu0 0
  %210 = vmatprep.subr.bf16.mxu0 0
  %211 = vmatpush2.bf16.msra.mxu0 0
  %212 = vmatprep.subr.bf16.mxu0 0
  %213 = vmatpush2.bf16.msra.mxu0 0
  %214 = vmatprep.subr.bf16.mxu0 0
  %215 = vmatpush2.bf16.msra.mxu0 0
  %216 = vmatprep.mubr.bf16.mxu0 0
  %217 = vmatmul.mubr.bf16.gmra.mxu0 %v170
  %v218 = vpop.f32.mrf.mxu0
  %v219 = vadd.f32 %v48, %v218
  %v220 = vpop.f32.mrf.mxu0
  %v221 = vadd.f32 %v52, %v220
  %v222 = vpop.f32.mrf.mxu0
  %v223 = vadd.f32 %v48, %v222
  %v224 = vpop.f32.mrf.mxu0
  %v225 = vadd.f32 %v52, %v224
  %226 = vmatprep.mubr.bf16.mxu0 0
  %227 = vmatmul.mubr.bf16.gmra.mxu0 %v173
  %v228 = vpop.f32.mrf.mxu0
  %v229 = vadd.f32 %v48, %v228
  %v230 = vpop.f32.mrf.mxu0
  %v231 = vadd.f32 %v52, %v230
  %v232 = vpop.f32.mrf.mxu0
  %v233 = vadd.f32 %v48, %v232
  %v234 = vpop.f32.mrf.mxu0
  %v235 = vadd.f32 %v52, %v234
  %236 = vmatprep.mubr.bf16.mxu0 0
  %237 = vmatmul.mubr.bf16.gmra.mxu0 %v176
  %v238 = vpop.f32.mrf.mxu0
  %v239 = vadd.f32 %v48, %v238
  %v240 = vpop.f32.mrf.mxu0
  %v241 = vadd.f32 %v52, %v240
  %v242 = vpop.f32.mrf.mxu0
  %v243 = vadd.f32 %v48, %v242
  %v244 = vpop.f32.mrf.mxu0
  %v245 = vadd.f32 %v52, %v244
  %246 = vmatprep.mubr.bf16.mxu0 0
  %247 = vmatmul.mubr.bf16.gmra.mxu0 %v179
  %v248 = vpop.f32.mrf.mxu0
  %v249 = vadd.f32 %v48, %v248
  %v250 = vpop.f32.mrf.mxu0
  %v251 = vadd.f32 %v52, %v250
  %v252 = vpop.f32.mrf.mxu0
  %v253 = vadd.f32 %v48, %v252
  %v254 = vpop.f32.mrf.mxu0
  %v255 = vadd.f32 %v52, %v254
  %256 = vmatprep.mubr.bf16.mxu0 0
  %257 = vmatmul.mubr.bf16.gmra.mxu0 %v182
  %v258 = vpop.f32.mrf.mxu0
  %v259 = vadd.f32 %v48, %v258
  %v260 = vpop.f32.mrf.mxu0
  %v261 = vadd.f32 %v52, %v260
  %v262 = vpop.f32.mrf.mxu0
  %v263 = vpop.f32.mrf.mxu0
  %264 = vdwg.mxu0
  %265 = vmatprep.subr.bf16.mxu0 0
  %266 = vmatpush1.bf16.msra.mxu0 0
  %267 = vmatprep.subr.bf16.mxu0 0
  %268 = vmatpush1.bf16.msra.mxu0 0
  %269 = vmatprep.subr.bf16.mxu0 0
  %270 = vmatpush1.bf16.msra.mxu0 0
  %271 = vmatprep.subr.bf16.mxu0 0
  %272 = vmatpush1.bf16.msra.mxu0 0
  %273 = vmatprep.subr.bf16.mxu0 %v151
  %274 = vmatpush1.bf16.msra.mxu0 %v150
  %275 = vmatprep.subr.bf16.mxu0 %v147
  %276 = vmatpush1.bf16.msra.mxu0 %v146
  %277 = vmatprep.subr.bf16.mxu0 %v143
  %278 = vmatpush1.bf16.msra.mxu0 %v142
  %279 = vmatprep.subr.bf16.mxu0 %v139
  %280 = vmatpush1.bf16.msra.mxu0 %v138
  %281 = vmatprep.subr.bf16.mxu0 0
  %282 = vmatpush2.bf16.msra.mxu0 0
  %283 = vmatprep.subr.bf16.mxu0 0
  %284 = vmatpush2.bf16.msra.mxu0 0
  %285 = vmatprep.subr.bf16.mxu0 0
  %286 = vmatpush2.bf16.msra.mxu0 0
  %287 = vmatprep.subr.bf16.mxu0 0
  %288 = vmatpush2.bf16.msra.mxu0 0
  %289 = vmatprep.subr.bf16.mxu0 0
  %290 = vmatpush2.bf16.msra.mxu0 0
  %291 = vmatprep.subr.bf16.mxu0 0
  %292 = vmatpush2.bf16.msra.mxu0 0
  %293 = vmatprep.subr.bf16.mxu0 0
  %294 = vmatpush2.bf16.msra.mxu0 0
  %295 = vmatprep.subr.bf16.mxu0 0
  %296 = vmatpush2.bf16.msra.mxu0 0
  %297 = vmatprep.mubr.bf16.mxu0 0
  %298 = vmatmul.mubr.bf16.gmra.mxu0 %v170
  %v299 = vpop.f32.mrf.mxu0
  %v300 = vadd.f32 %v56, %v299
  %v301 = vpop.f32.mrf.mxu0
  %v302 = vadd.f32 %v60, %v301
  %v303 = vpop.f32.mrf.mxu0
  %v304 = vadd.f32 %v56, %v303
  %v305 = vpop.f32.mrf.mxu0
  %v306 = vadd.f32 %v60, %v305
  %307 = vmatprep.mubr.bf16.mxu0 0
  %308 = vmatmul.mubr.bf16.gmra.mxu0 %v173
  %v309 = vpop.f32.mrf.mxu0
  %v310 = vadd.f32 %v56, %v309
  %v311 = vpop.f32.mrf.mxu0
  %v312 = vadd.f32 %v60, %v311
  %v313 = vpop.f32.mrf.mxu0
  %v314 = vadd.f32 %v56, %v313
  %v315 = vpop.f32.mrf.mxu0
  %v316 = vadd.f32 %v60, %v315
  %317 = vmatprep.mubr.bf16.mxu0 0
  %318 = vmatmul.mubr.bf16.gmra.mxu0 %v176
  %v319 = vpop.f32.mrf.mxu0
  %v320 = vadd.f32 %v56, %v319
  %v321 = vpop.f32.mrf.mxu0
  %v322 = vadd.f32 %v60, %v321
  %v323 = vpop.f32.mrf.mxu0
  %v324 = vadd.f32 %v56, %v323
  %v325 = vpop.f32.mrf.mxu0
  %v326 = vadd.f32 %v60, %v325
  %327 = vmatprep.mubr.bf16.mxu0 0
  %328 = vmatmul.mubr.bf16.gmra.mxu0 %v179
  %v329 = vpop.f32.mrf.mxu0
  %v330 = vadd.f32 %v56, %v329
  %v331 = vpop.f32.mrf.mxu0
  %v332 = vadd.f32 %v60, %v331
  %v333 = vpop.f32.mrf.mxu0
  %v334 = vadd.f32 %v56, %v333
  %v335 = vpop.f32.mrf.mxu0
  %v336 = vadd.f32 %v60, %v335
  %337 = vmatprep.mubr.bf16.mxu0 0
  %338 = vmatmul.mubr.bf16.gmra.mxu0 %v182
  %v339 = vpop.f32.mrf.mxu0
  %v340 = vadd.f32 %v56, %v339
  %v341 = vpop.f32.mrf.mxu0
  %v342 = vadd.f32 %v60, %v341
  %v343 = vpop.f32.mrf.mxu0
  %v344 = vpop.f32.mrf.mxu0
  %345 = vdwg.mxu0
  %v346 = vpack.c.bf16 %v223, %v219
  %v347 = vpack.c.bf16 %v225, %v221
  %v348 = vpack.c.bf16 %v304, %v300
  %v349 = vpack.c.bf16 %v306, %v302
  %v350 = vpack.c.bf16 %v233, %v229
  %v351 = vpack.c.bf16 %v235, %v231
  %v352 = vpack.c.bf16 %v314, %v310
  %v353 = vpack.c.bf16 %v316, %v312
  %v354 = vpack.c.bf16 %v243, %v239
  %v355 = vpack.c.bf16 %v245, %v241
  %v356 = vpack.c.bf16 %v324, %v320
  %v357 = vpack.c.bf16 %v326, %v322
  %v358 = vpack.c.bf16 %v253, %v249
  %v359 = vpack.c.bf16 %v255, %v251
  %v360 = vpack.c.bf16 %v334, %v330
  %v361 = vpack.c.bf16 %v336, %v332
  %v362 = vpack.c.bf16 %v259, %v259
  %v363 = vpack.c.bf16 %v261, %v261
  %v364 = vpack.c.bf16 %v340, %v340
  %v365 = vpack.c.bf16 %v342, %v342
  %v386 = vunpack.c.l.b16 %v346
  %v387 = vunpack.c.l.b16 %v347
  %v388 = vunpack.c.l.b16 %v348
  %v389 = vunpack.c.l.b16 %v349
  %v390 = vunpack.c.h.b16 %v346
  %v391 = vunpack.c.h.b16 %v347
  %v392 = vunpack.c.h.b16 %v348
  %v393 = vunpack.c.h.b16 %v349
  %v394 = vunpack.c.l.b16 %v350
  %v395 = vunpack.c.l.b16 %v351
  %v396 = vunpack.c.l.b16 %v352
  %v397 = vunpack.c.l.b16 %v353
  %v398 = vunpack.c.h.b16 %v350
  %v399 = vunpack.c.h.b16 %v351
  %v400 = vunpack.c.h.b16 %v352
  %v401 = vunpack.c.h.b16 %v353
  %v402 = vunpack.c.l.b16 %v354
  %v403 = vunpack.c.l.b16 %v355
  %v404 = vunpack.c.l.b16 %v356
  %v405 = vunpack.c.l.b16 %v357
  %v406 = vunpack.c.h.b16 %v354
  %v407 = vunpack.c.h.b16 %v355
  %v408 = vunpack.c.h.b16 %v356
  %v409 = vunpack.c.h.b16 %v357
  %v410 = vunpack.c.l.b16 %v358
  %v411 = vunpack.c.l.b16 %v359
  %v412 = vunpack.c.l.b16 %v360
  %v413 = vunpack.c.l.b16 %v361
  %v414 = vunpack.c.h.b16 %v358
  %v415 = vunpack.c.h.b16 %v359
  %v416 = vunpack.c.h.b16 %v360
  %v417 = vunpack.c.h.b16 %v361
  %v418 = vunpack.c.l.b16 %v362
  %v419 = vunpack.c.l.b16 %v363
  %v420 = vunpack.c.l.b16 %v364
  %v421 = vunpack.c.l.b16 %v365
  %v422 = vpack.c.b16 %v387, %v386
  %v423 = vpack.c.b16 %v389, %v388
  %v424 = vpack.c.b16 %v391, %v390
  %v425 = vpack.c.b16 %v393, %v392
  %v426 = vpack.c.b16 %v395, %v394
  %v427 = vpack.c.b16 %v397, %v396
  %v428 = vpack.c.b16 %v399, %v398
  %v429 = vpack.c.b16 %v401, %v400
  %v430 = vpack.c.b16 %v403, %v402
  %v431 = vpack.c.b16 %v405, %v404
  %v432 = vpack.c.b16 %v407, %v406
  %v433 = vpack.c.b16 %v409, %v408
  %v434 = vpack.c.b16 %v411, %v410
  %v435 = vpack.c.b16 %v413, %v412
  %v436 = vpack.c.b16 %v415, %v414
  %v437 = vpack.c.b16 %v417, %v416
  %v438 = vpack.c.b16 %v419, %v418
  %v439 = vpack.c.b16 %v421, %v420
  %458 = vst [vmem:[%s4] sm:$0xff] %v422
  %459 = vst [vmem:[%s4 + $0x8] sm:$0xff] %v423
  %460 = vst [vmem:[%s4 + $0x10] sm:$0xff] %v424
  %461 = vst [vmem:[%s4 + $0x18] sm:$0xff] %v425
  %462 = vst [vmem:[%s4 + $0x20] sm:$0xff] %v426
  %463 = vst [vmem:[%s4 + $0x28] sm:$0xff] %v427
  %464 = vst [vmem:[%s4 + $0x30] sm:$0xff] %v428
  %465 = vst [vmem:[%s4 + $0x38] sm:$0xff] %v429
  %466 = vst [vmem:[%s4 + $0x40] sm:$0xff] %v430
  %467 = vst [vmem:[%s4 + $0x48] sm:$0xff] %v431
  %468 = vst [vmem:[%s4 + $0x50] sm:$0xff] %v432
  %469 = vst [vmem:[%s4 + $0x58] sm:$0xff] %v433
  %470 = vst [vmem:[%s4 + $0x60] sm:$0xff] %v434
  %471 = vst [vmem:[%s4 + $0x68] sm:$0xff] %v435
  %472 = vst [vmem:[%s4 + $0x70] sm:$0xff] %v436
  %473 = vst [vmem:[%s4 + $0x78] sm:$0xff] %v437
  %474 = vst [vmem:[%s4 + $0x80] sm:$0xff] %v438
  %475 = vst [vmem:[%s4 + $0x88] sm:$0xff] %v439
  // Predicated region
  $region18: #{decoder_forward.5} parent=0 // pred_check
    _
  $region19: #{decoder_forward.5} parent=0 // pred_check_branch
    %477 = sbr.rel (0) target = $region21
  $region20: #{decoder_forward.5} parent=0 // pred_region
    _
  $region21: #{decoder_forward.5} parent=0 // pred_fallthru
    _
  // Predicated region
  $region22: #{decoder_forward.5} parent=0 // pred_check
    _
  $region23: #{decoder_forward.5} parent=0 // pred_check_branch
    %479 = sbr.rel (0) target = $region25
  $region24: #{decoder_forward.5} parent=0 // pred_region
    _
  $region25: #{decoder_forward.5} parent=0 // pred_fallthru
    _

// kernel: decoder_forward.4
$region0: #{decoder_forward.4}
  #allocation0 [shape = 'u32[]', space=smem, size = 0x4, offset = 0x4, fixed_abs, tag = 'smem constant byte address 0x4 - core index']
  #allocation1 [shape = 'u32[144,128]{1,0:T(1,128)}', space=vmem, size = 0x12000, scoped, tag = 'internal scratch']
  %s0 = inlined_call_operand.vmem [shape: f32[8,32], index: 0, kind: input, shape index: {}]
  %s1 = inlined_call_operand.vmem [shape: f32[1,32], index: 1, kind: input, shape index: {}]
  %s2 = inlined_call_operand.hbm [shape: bf16[32,2304], index: 2, kind: input, shape index: {}]
  %s3 = inlined_call_operand.vmem [shape: f32[1,2304], index: 3, kind: input, shape index: {}]
  %s4 = inlined_call_operand.vmem [shape: bf16[8,2304], index: 4, kind: output, shape index: {}]
  %s5 = sld [smem:[#allocation0]]
  $region30: #{decoder_forward.4} parent=0
    _
  %s7 = ssub.s32 1, %s5
  %s8 = scalar_select 0, %s7, %s5
  $region1: #{decoder_forward.4} parent=0
    #allocation2 [shape = 'u8[147456]{0}', space=vmem, size = 0x24000, scoped, tag = 'input window, operand 2, single buffered']
    #allocation3 [shape = 's32[1]{0}', space=sflag, size = 0x4, scoped, tag = 'scoped memory for decoder_forward.4']
    %9 = vsyncpa [#allocation3], 0
    // Predicated region
    $region2: #{decoder_forward.4} parent=1 // pred_check
      _
    $region3: #{decoder_forward.4} parent=1 // pred_check_branch
      %11 = sbr.rel (0) target = $region5
    $region4: #{decoder_forward.4} parent=1 // pred_region
      _
    $region5: #{decoder_forward.4} parent=1 // pred_fallthru
      _
    // Predicated region
    $region6: #{decoder_forward.4} parent=1 // pred_check
      _
    $region7: #{decoder_forward.4} parent=1 // pred_check_branch
      %13 = sbr.rel (0) target = $region9
    $region8: #{decoder_forward.4} parent=1 // pred_region
      _
    $region9: #{decoder_forward.4} parent=1 // pred_fallthru
      _
    // Predicated region
    $region10: #{decoder_forward.4} parent=1 // pred_check
      _
    $region11: #{decoder_forward.4} parent=1 // pred_check_branch
      %15 = sbr.rel (0) target = $region13
    $region12: #{decoder_forward.4} parent=1 // pred_region
      %s17 = ssub.s32 4608, 4608
      %18 = vsyncadd [#allocation3], %s17
      %s19 = sshll.u32 [#allocation2], 4
      %s20 = int_to_ptr.vmem [resolvable:$true] %s19
      %25 = dma.hbm_to_vmem [thread:$0]  %s2, 4608, %s20, [#allocation3], 1152, 1152, 72
    $region13: #{decoder_forward.4} parent=1 // pred_fallthru
      _
    // Predicated region
    $region14: #{decoder_forward.4} parent=1 // pred_check
      _
    $region15: #{decoder_forward.4} parent=1 // pred_check_branch
      %27 = sbr.rel (0) target = $region17
    $region16: #{decoder_forward.4} parent=1 // pred_region
      _
    $region17: #{decoder_forward.4} parent=1 // pred_fallthru
      _
    // Predicated region
    $region18: #{decoder_forward.4} parent=1 // pred_check
      _
    $region19: #{decoder_forward.4} parent=1 // pred_check_branch
      %29 = sbr.rel (0) target = $region21
    $region20: #{decoder_forward.4} parent=1 // pred_region
      %30 = dma.done [#allocation3], 4608
    $region21: #{decoder_forward.4} parent=1 // pred_fallthru
      _
    %v32 = vld [vmem:[%s0] sm:$0xff]
    %v33 = vpack.c.bf16 %v32, %v32
    %v34 = vld [vmem:[#allocation2] sm:$0xff]
    %v35 = vld [vmem:[#allocation2 + $0x8] sm:$0xff]
    %v36 = vld [vmem:[#allocation2 + $0x10] sm:$0xff]
    %v37 = vld [vmem:[#allocation2 + $0x18] sm:$0xff]
    %v38 = vld [vmem:[#allocation2 + $0x20] sm:$0xff]
    %v39 = vld [vmem:[#allocation2 + $0x28] sm:$0xff]
    %v40 = vld [vmem:[#allocation2 + $0x30] sm:$0xff]
    %v41 = vld [vmem:[#allocation2 + $0x38] sm:$0xff]
    %v42 = vld [vmem:[#allocation2 + $0x40] sm:$0xff]
    %v43 = vld [vmem:[#allocation2 + $0x48] sm:$0xff]
    %v44 = vld [vmem:[#allocation2 + $0x50] sm:$0xff]
    %v45 = vld [vmem:[#allocation2 + $0x58] sm:$0xff]
    %v46 = vld [vmem:[#allocation2 + $0x60] sm:$0xff]
    %v47 = vld [vmem:[#allocation2 + $0x68] sm:$0xff]
    %v48 = vld [vmem:[#allocation2 + $0x70] sm:$0xff]
    %v49 = vld [vmem:[#allocation2 + $0x78] sm:$0xff]
    %v50 = vld [vmem:[#allocation2 + $0x80] sm:$0xff]
    %v51 = vld [vmem:[#allocation2 + $0x88] sm:$0xff]
    %v52 = vld [vmem:[#allocation2 + $0x90] sm:$0xff]
    %v53 = vld [vmem:[#allocation2 + $0x98] sm:$0xff]
    %v54 = vld [vmem:[#allocation2 + $0xa0] sm:$0xff]
    %v55 = vld [vmem:[#allocation2 + $0xa8] sm:$0xff]
    %v56 = vld [vmem:[#allocation2 + $0xb0] sm:$0xff]
    %v57 = vld [vmem:[#allocation2 + $0xb8] sm:$0xff]
    %v58 = vld [vmem:[#allocation2 + $0xc0] sm:$0xff]
    %v59 = vld [vmem:[#allocation2 + $0xc8] sm:$0xff]
    %v60 = vld [vmem:[#allocation2 + $0xd0] sm:$0xff]
    %v61 = vld [vmem:[#allocation2 + $0xd8] sm:$0xff]
    %v62 = vld [vmem:[#allocation2 + $0xe0] sm:$0xff]
    %v63 = vld [vmem:[#allocation2 + $0xe8] sm:$0xff]
    %v64 = vld [vmem:[#allocation2 + $0xf0] sm:$0xff]
    %v65 = vld [vmem:[#allocation2 + $0xf8] sm:$0xff]
    %v66 = vld [vmem:[#allocation2 + $0x100] sm:$0xff]
    %v67 = vld [vmem:[#allocation2 + $0x108] sm:$0xff]
    %v68 = vld [vmem:[#allocation2 + $0x110] sm:$0xff]
    %v69 = vld [vmem:[#allocation2 + $0x118] sm:$0xff]
    %v70 = vld [vmem:[%s3] sm:$0xff]
    %v71 = vld [vmem:[%s3 + $0x8] sm:$0xff]
    %v72 = vld [vmem:[%s3 + $0x10] sm:$0x3]
    %v76 = vlaneseq
    %v77 = vshrl.u32 %v76, 7
    %v78 = vsub.s32 0, %v77
    %v79 = vrot.slane %v70, %v78
    %v80 = vlaneseq
    %v81 = vshrl.u32 %v80, 7
    %v82 = vsub.s32 1, %v81
    %v83 = vrot.slane %v70, %v82
    %v84 = vlaneseq
    %v85 = vshrl.u32 %v84, 7
    %v86 = vsub.s32 2, %v85
    %v87 = vrot.slane %v70, %v86
    %v88 = vlaneseq
    %v89 = vshrl.u32 %v88, 7
    %v90 = vsub.s32 3, %v89
    %v91 = vrot.slane %v70, %v90
    %v92 = vlaneseq
    %v93 = vshrl.u32 %v92, 7
    %v94 = vsub.s32 4, %v93
    %v95 = vrot.slane %v70, %v94
    %v96 = vlaneseq
    %v97 = vshrl.u32 %v96, 7
    %v98 = vsub.s32 5, %v97
    %v99 = vrot.slane %v70, %v98
    %v100 = vlaneseq
    %v101 = vshrl.u32 %v100, 7
    %v102 = vsub.s32 6, %v101
    %v103 = vrot.slane %v70, %v102
    %v104 = vlaneseq
    %v105 = vshrl.u32 %v104, 7
    %v106 = vsub.s32 7, %v105
    %v107 = vrot.slane %v70, %v106
    %v108 = vlaneseq
    %v109 = vshrl.u32 %v108, 7
    %v110 = vsub.s32 0, %v109
    %v111 = vrot.slane %v71, %v110
    %v112 = vlaneseq
    %v113 = vshrl.u32 %v112, 7
    %v114 = vsub.s32 1, %v113
    %v115 = vrot.slane %v71, %v114
    %v116 = vlaneseq
    %v117 = vshrl.u32 %v116, 7
    %v118 = vsub.s32 2, %v117
    %v119 = vrot.slane %v71, %v118
    %v120 = vlaneseq
    %v121 = vshrl.u32 %v120, 7
    %v122 = vsub.s32 3, %v121
    %v123 = vrot.slane %v71, %v122
    %v124 = vlaneseq
    %v125 = vshrl.u32 %v124, 7
    %v126 = vsub.s32 4, %v125
    %v127 = vrot.slane %v71, %v126
    %v128 = vlaneseq
    %v129 = vshrl.u32 %v128, 7
    %v130 = vsub.s32 5, %v129
    %v131 = vrot.slane %v71, %v130
    %v132 = vlaneseq
    %v133 = vshrl.u32 %v132, 7
    %v134 = vsub.s32 6, %v133
    %v135 = vrot.slane %v71, %v134
    %v136 = vlaneseq
    %v137 = vshrl.u32 %v136, 7
    %v138 = vsub.s32 7, %v137
    %v139 = vrot.slane %v71, %v138
    %v140 = vlaneseq
    %v141 = vshrl.u32 %v140, 7
    %v142 = vsub.s32 0, %v141
    %v143 = vrot.slane %v72, %v142
    %v144 = vlaneseq
    %v145 = vshrl.u32 %v144, 7
    %v146 = vsub.s32 1, %v145
    %v147 = vrot.slane %v72, %v146
    %v202 = vunpack.c.l.b16 %v34
    %v203 = vunpack.c.h.b16 %v34
    %v204 = vunpack.c.l.b16 %v35
    %v205 = vunpack.c.h.b16 %v35
    %v206 = vunpack.c.l.b16 %v36
    %v207 = vunpack.c.h.b16 %v36
    %v208 = vunpack.c.l.b16 %v37
    %v209 = vunpack.c.h.b16 %v37
    %v210 = vunpack.c.l.b16 %v38
    %v211 = vunpack.c.h.b16 %v38
    %v212 = vunpack.c.l.b16 %v39
    %v213 = vunpack.c.h.b16 %v39
    %v214 = vunpack.c.l.b16 %v40
    %v215 = vunpack.c.h.b16 %v40
    %v216 = vunpack.c.l.b16 %v41
    %v217 = vunpack.c.h.b16 %v41
    %v218 = vunpack.c.l.b16 %v42
    %v219 = vunpack.c.h.b16 %v42
    %v220 = vunpack.c.l.b16 %v43
    %v221 = vunpack.c.h.b16 %v43
    %v222 = vunpack.c.l.b16 %v44
    %v223 = vunpack.c.h.b16 %v44
    %v224 = vunpack.c.l.b16 %v45
    %v225 = vunpack.c.h.b16 %v45
    %v226 = vunpack.c.l.b16 %v46
    %v227 = vunpack.c.h.b16 %v46
    %v228 = vunpack.c.l.b16 %v47
    %v229 = vunpack.c.h.b16 %v47
    %v230 = vunpack.c.l.b16 %v48
    %v231 = vunpack.c.h.b16 %v48
    %v232 = vunpack.c.l.b16 %v49
    %v233 = vunpack.c.h.b16 %v49
    %v234 = vunpack.c.l.b16 %v50
    %v235 = vunpack.c.h.b16 %v50
    %v236 = vunpack.c.l.b16 %v51
    %v237 = vunpack.c.h.b16 %v51
    %v238 = vunpack.c.l.b16 %v52
    %v239 = vunpack.c.h.b16 %v52
    %v240 = vunpack.c.l.b16 %v53
    %v241 = vunpack.c.h.b16 %v53
    %v242 = vunpack.c.l.b16 %v54
    %v243 = vunpack.c.h.b16 %v54
    %v244 = vunpack.c.l.b16 %v55
    %v245 = vunpack.c.h.b16 %v55
    %v246 = vunpack.c.l.b16 %v56
    %v247 = vunpack.c.h.b16 %v56
    %v248 = vunpack.c.l.b16 %v57
    %v249 = vunpack.c.h.b16 %v57
    %v250 = vunpack.c.l.b16 %v58
    %v251 = vunpack.c.h.b16 %v58
    %v252 = vunpack.c.l.b16 %v59
    %v253 = vunpack.c.h.b16 %v59
    %v254 = vunpack.c.l.b16 %v60
    %v255 = vunpack.c.h.b16 %v60
    %v256 = vunpack.c.l.b16 %v61
    %v257 = vunpack.c.h.b16 %v61
    %v258 = vunpack.c.l.b16 %v62
    %v259 = vunpack.c.h.b16 %v62
    %v260 = vunpack.c.l.b16 %v63
    %v261 = vunpack.c.h.b16 %v63
    %v262 = vunpack.c.l.b16 %v64
    %v263 = vunpack.c.h.b16 %v64
    %v264 = vunpack.c.l.b16 %v65
    %v265 = vunpack.c.h.b16 %v65
    %v266 = vunpack.c.l.b16 %v66
    %v267 = vunpack.c.h.b16 %v66
    %v268 = vunpack.c.l.b16 %v67
    %v269 = vunpack.c.h.b16 %v67
    %v270 = vunpack.c.l.b16 %v68
    %v271 = vunpack.c.h.b16 %v68
    %v272 = vunpack.c.l.b16 %v69
    %v273 = vunpack.c.h.b16 %v69
    %v274 = vpack.c.b16 %v220, %v202
    %v275 = vpack.c.b16 %v221, %v203
    %v276 = vpack.c.b16 %v222, %v204
    %v277 = vpack.c.b16 %v223, %v205
    %v278 = vpack.c.b16 %v224, %v206
    %v279 = vpack.c.b16 %v225, %v207
    %v280 = vpack.c.b16 %v226, %v208
    %v281 = vpack.c.b16 %v227, %v209
    %v282 = vpack.c.b16 %v228, %v210
    %v283 = vpack.c.b16 %v229, %v211
    %v284 = vpack.c.b16 %v230, %v212
    %v285 = vpack.c.b16 %v231, %v213
    %v286 = vpack.c.b16 %v232, %v214
    %v287 = vpack.c.b16 %v233, %v215
    %v288 = vpack.c.b16 %v234, %v216
    %v289 = vpack.c.b16 %v235, %v217
    %v290 = vpack.c.b16 %v236, %v218
    %v291 = vpack.c.b16 %v237, %v219
    %v292 = vpack.c.b16 %v256, %v238
    %v293 = vpack.c.b16 %v257, %v239
    %v294 = vpack.c.b16 %v258, %v240
    %v295 = vpack.c.b16 %v259, %v241
    %v296 = vpack.c.b16 %v260, %v242
    %v297 = vpack.c.b16 %v261, %v243
    %v298 = vpack.c.b16 %v262, %v244
    %v299 = vpack.c.b16 %v263, %v245
    %v300 = vpack.c.b16 %v264, %v246
    %v301 = vpack.c.b16 %v265, %v247
    %v302 = vpack.c.b16 %v266, %v248
    %v303 = vpack.c.b16 %v267, %v249
    %v304 = vpack.c.b16 %v268, %v250
    %v305 = vpack.c.b16 %v269, %v251
    %v306 = vpack.c.b16 %v270, %v252
    %v307 = vpack.c.b16 %v271, %v253
    %v308 = vpack.c.b16 %v272, %v254
    %v309 = vpack.c.b16 %v273, %v255
    %vm346 = vcmask 261120
    %v348 = vsel %vm346, %v33, 0
    %350 = vmatprep.subr.bf16.mxu0 0
    %351 = vmatpush1.bf16.msra.mxu0 0
    %352 = vmatprep.subr.bf16.mxu0 0
    %353 = vmatpush1.bf16.msra.mxu0 0
    %354 = vmatprep.subr.bf16.mxu0 0
    %355 = vmatpush1.bf16.msra.mxu0 0
    %356 = vmatprep.subr.bf16.mxu0 0
    %357 = vmatpush1.bf16.msra.mxu0 0
    %358 = vmatprep.subr.bf16.mxu0 0
    %359 = vmatpush1.bf16.msra.mxu0 0
    %360 = vmatprep.subr.bf16.mxu0 0
    %361 = vmatpush1.bf16.msra.mxu0 0
    %362 = vmatprep.subr.bf16.mxu0 %v293
    %363 = vmatpush1.bf16.msra.mxu0 %v292
    %364 = vmatprep.subr.bf16.mxu0 %v275
    %365 = vmatpush1.bf16.msra.mxu0 %v274
    %366 = vmatprep.subr.bf16.mxu0 0
    %367 = vmatpush2.bf16.msra.mxu0 0
    %368 = vmatprep.subr.bf16.mxu0 0
    %369 = vmatpush2.bf16.msra.mxu0 0
    %370 = vmatprep.subr.bf16.mxu0 0
    %371 = vmatpush2.bf16.msra.mxu0 0
    %372 = vmatprep.subr.bf16.mxu0 0
    %373 = vmatpush2.bf16.msra.mxu0 0
    %374 = vmatprep.subr.bf16.mxu0 0
    %375 = vmatpush2.bf16.msra.mxu0 0
    %376 = vmatprep.subr.bf16.mxu0 0
    %377 = vmatpush2.bf16.msra.mxu0 0
    %378 = vmatprep.subr.bf16.mxu0 0
    %379 = vmatpush2.bf16.msra.mxu0 0
    %380 = vmatprep.subr.bf16.mxu0 0
    %381 = vmatpush2.bf16.msra.mxu0 0
    %382 = vmatprep.mubr.bf16.mxu0 0
    %383 = vmatmul.mubr.bf16.gmra.mxu0 %v348
    %v384 = vpop.f32.mrf.mxu0
    %v385 = vadd.f32 %v79, %v384
    %v386 = vpop.f32.mrf.mxu0
    %v387 = vadd.f32 %v83, %v386
    %v388 = vpop.f32.mrf.mxu0
    %v389 = vpop.f32.mrf.mxu0
    %390 = vdwg.mxu0
    %391 = vmatprep.subr.bf16.mxu0 0
    %392 = vmatpush1.bf16.msra.mxu0 0
    %393 = vmatprep.subr.bf16.mxu0 0
    %394 = vmatpush1.bf16.msra.mxu0 0
    %395 = vmatprep.subr.bf16.mxu0 0
    %396 = vmatpush1.bf16.msra.mxu0 0
    %397 = vmatprep.subr.bf16.mxu0 0
    %398 = vmatpush1.bf16.msra.mxu0 0
    %399 = vmatprep.subr.bf16.mxu0 0
    %400 = vmatpush1.bf16.msra.mxu0 0
    %401 = vmatprep.subr.bf16.mxu0 0
    %402 = vmatpush1.bf16.msra.mxu0 0
    %403 = vmatprep.subr.bf16.mxu0 %v295
    %404 = vmatpush1.bf16.msra.mxu0 %v294
    %405 = vmatprep.subr.bf16.mxu0 %v277
    %406 = vmatpush1.bf16.msra.mxu0 %v276
    %407 = vmatprep.subr.bf16.mxu0 0
    %408 = vmatpush2.bf16.msra.mxu0 0
    %409 = vmatprep.subr.bf16.mxu0 0
    %410 = vmatpush2.bf16.msra.mxu0 0
    %411 = vmatprep.subr.bf16.mxu0 0
    %412 = vmatpush2.bf16.msra.mxu0 0
    %413 = vmatprep.subr.bf16.mxu0 0
    %414 = vmatpush2.bf16.msra.mxu0 0
    %415 = vmatprep.subr.bf16.mxu0 0
    %416 = vmatpush2.bf16.msra.mxu0 0
    %417 = vmatprep.subr.bf16.mxu0 0
    %418 = vmatpush2.bf16.msra.mxu0 0
    %419 = vmatprep.subr.bf16.mxu0 0
    %420 = vmatpush2.bf16.msra.mxu0 0
    %421 = vmatprep.subr.bf16.mxu0 0
    %422 = vmatpush2.bf16.msra.mxu0 0
    %423 = vmatprep.mubr.bf16.mxu0 0
    %424 = vmatmul.mubr.bf16.gmra.mxu0 %v348
    %v425 = vpop.f32.mrf.mxu0
    %v426 = vadd.f32 %v87, %v425
    %v427 = vpop.f32.mrf.mxu0
    %v428 = vadd.f32 %v91, %v427
    %v429 = vpop.f32.mrf.mxu0
    %v430 = vpop.f32.mrf.mxu0
    %431 = vdwg.mxu0
    %432 = vmatprep.subr.bf16.mxu0 0
    %433 = vmatpush1.bf16.msra.mxu0 0
    %434 = vmatprep.subr.bf16.mxu0 0
    %435 = vmatpush1.bf16.msra.mxu0 0
    %436 = vmatprep.subr.bf16.mxu0 0
    %437 = vmatpush1.bf16.msra.mxu0 0
    %438 = vmatprep.subr.bf16.mxu0 0
    %439 = vmatpush1.bf16.msra.mxu0 0
    %440 = vmatprep.subr.bf16.mxu0 0
    %441 = vmatpush1.bf16.msra.mxu0 0
    %442 = vmatprep.subr.bf16.mxu0 0
    %443 = vmatpush1.bf16.msra.mxu0 0
    %444 = vmatprep.subr.bf16.mxu0 %v297
    %445 = vmatpush1.bf16.msra.mxu0 %v296
    %446 = vmatprep.subr.bf16.mxu0 %v279
    %447 = vmatpush1.bf16.msra.mxu0 %v278
    %448 = vmatprep.subr.bf16.mxu0 0
    %449 = vmatpush2.bf16.msra.mxu0 0
    %450 = vmatprep.subr.bf16.mxu0 0
    %451 = vmatpush2.bf16.msra.mxu0 0
    %452 = vmatprep.subr.bf16.mxu0 0
    %453 = vmatpush2.bf16.msra.mxu0 0
    %454 = vmatprep.subr.bf16.mxu0 0
    %455 = vmatpush2.bf16.msra.mxu0 0
    %456 = vmatprep.subr.bf16.mxu0 0
    %457 = vmatpush2.bf16.msra.mxu0 0
    %458 = vmatprep.subr.bf16.mxu0 0
    %459 = vmatpush2.bf16.msra.mxu0 0
    %460 = vmatprep.subr.bf16.mxu0 0
    %461 = vmatpush2.bf16.msra.mxu0 0
    %462 = vmatprep.subr.bf16.mxu0 0
    %463 = vmatpush2.bf16.msra.mxu0 0
    %464 = vmatprep.mubr.bf16.mxu0 0
    %465 = vmatmul.mubr.bf16.gmra.mxu0 %v348
    %v466 = vpop.f32.mrf.mxu0
    %v467 = vadd.f32 %v95, %v466
    %v468 = vpop.f32.mrf.mxu0
    %v469 = vadd.f32 %v99, %v468
    %v470 = vpop.f32.mrf.mxu0
    %v471 = vpop.f32.mrf.mxu0
    %472 = vdwg.mxu0
    %473 = vmatprep.subr.bf16.mxu0 0
    %474 = vmatpush1.bf16.msra.mxu0 0
    %475 = vmatprep.subr.bf16.mxu0 0
    %476 = vmatpush1.bf16.msra.mxu0 0
    %477 = vmatprep.subr.bf16.mxu0 0
    %478 = vmatpush1.bf16.msra.mxu0 0
    %479 = vmatprep.subr.bf16.mxu0 0
    %480 = vmatpush1.bf16.msra.mxu0 0
    %481 = vmatprep.subr.bf16.mxu0 0
    %482 = vmatpush1.bf16.msra.mxu0 0
    %483 = vmatprep.subr.bf16.mxu0 0
    %484 = vmatpush1.bf16.msra.mxu0 0
    %485 = vmatprep.subr.bf16.mxu0 %v299
    %486 = vmatpush1.bf16.msra.mxu0 %v298
    %487 = vmatprep.subr.bf16.mxu0 %v281
    %488 = vmatpush1.bf16.msra.mxu0 %v280
    %489 = vmatprep.subr.bf16.mxu0 0
    %490 = vmatpush2.bf16.msra.mxu0 0
    %491 = vmatprep.subr.bf16.mxu0 0
    %492 = vmatpush2.bf16.msra.mxu0 0
    %493 = vmatprep.subr.bf16.mxu0 0
    %494 = vmatpush2.bf16.msra.mxu0 0
    %495 = vmatprep.subr.bf16.mxu0 0
    %496 = vmatpush2.bf16.msra.mxu0 0
    %497 = vmatprep.subr.bf16.mxu0 0
    %498 = vmatpush2.bf16.msra.mxu0 0
    %499 = vmatprep.subr.bf16.mxu0 0
    %500 = vmatpush2.bf16.msra.mxu0 0
    %501 = vmatprep.subr.bf16.mxu0 0
    %502 = vmatpush2.bf16.msra.mxu0 0
    %503 = vmatprep.subr.bf16.mxu0 0
    %504 = vmatpush2.bf16.msra.mxu0 0
    %505 = vmatprep.mubr.bf16.mxu0 0
    %506 = vmatmul.mubr.bf16.gmra.mxu0 %v348
    %v507 = vpop.f32.mrf.mxu0
    %v508 = vadd.f32 %v103, %v507
    %v509 = vpop.f32.mrf.mxu0
    %v510 = vadd.f32 %v107, %v509
    %v511 = vpop.f32.mrf.mxu0
    %v512 = vpop.f32.mrf.mxu0
    %513 = vdwg.mxu0
    %514 = vmatprep.subr.bf16.mxu0 0
    %515 = vmatpush1.bf16.msra.mxu0 0
    %516 = vmatprep.subr.bf16.mxu0 0
    %517 = vmatpush1.bf16.msra.mxu0 0
    %518 = vmatprep.subr.bf16.mxu0 0
    %519 = vmatpush1.bf16.msra.mxu0 0
    %520 = vmatprep.subr.bf16.mxu0 0
    %521 = vmatpush1.bf16.msra.mxu0 0
    %522 = vmatprep.subr.bf16.mxu0 0
    %523 = vmatpush1.bf16.msra.mxu0 0
    %524 = vmatprep.subr.bf16.mxu0 0
    %525 = vmatpush1.bf16.msra.mxu0 0
    %526 = vmatprep.subr.bf16.mxu0 %v301
    %527 = vmatpush1.bf16.msra.mxu0 %v300
    %528 = vmatprep.subr.bf16.mxu0 %v283
    %529 = vmatpush1.bf16.msra.mxu0 %v282
    %530 = vmatprep.subr.bf16.mxu0 0
    %531 = vmatpush2.bf16.msra.mxu0 0
    %532 = vmatprep.subr.bf16.mxu0 0
    %533 = vmatpush2.bf16.msra.mxu0 0
    %534 = vmatprep.subr.bf16.mxu0 0
    %535 = vmatpush2.bf16.msra.mxu0 0
    %536 = vmatprep.subr.bf16.mxu0 0
    %537 = vmatpush2.bf16.msra.mxu0 0
    %538 = vmatprep.subr.bf16.mxu0 0
    %539 = vmatpush2.bf16.msra.mxu0 0
    %540 = vmatprep.subr.bf16.mxu0 0
    %541 = vmatpush2.bf16.msra.mxu0 0
    %542 = vmatprep.subr.bf16.mxu0 0
    %543 = vmatpush2.bf16.msra.mxu0 0
    %544 = vmatprep.subr.bf16.mxu0 0
    %545 = vmatpush2.bf16.msra.mxu0 0
    %546 = vmatprep.mubr.bf16.mxu0 0
    %547 = vmatmul.mubr.bf16.gmra.mxu0 %v348
    %v548 = vpop.f32.mrf.mxu0
    %v549 = vadd.f32 %v111, %v548
    %v550 = vpop.f32.mrf.mxu0
    %v551 = vadd.f32 %v115, %v550
    %v552 = vpop.f32.mrf.mxu0
    %v553 = vpop.f32.mrf.mxu0
    %554 = vdwg.mxu0
    %555 = vmatprep.subr.bf16.mxu0 0
    %556 = vmatpush1.bf16.msra.mxu0 0
    %557 = vmatprep.subr.bf16.mxu0 0
    %558 = vmatpush1.bf16.msra.mxu0 0
    %559 = vmatprep.subr.bf16.mxu0 0
    %560 = vmatpush1.bf16.msra.mxu0 0
    %561 = vmatprep.subr.bf16.mxu0 0
    %562 = vmatpush1.bf16.msra.mxu0 0
    %563 = vmatprep.subr.bf16.mxu0 0
    %564 = vmatpush1.bf16.msra.mxu0 0
    %565 = vmatprep.subr.bf16.mxu0 0
    %566 = vmatpush1.bf16.msra.mxu0 0
    %567 = vmatprep.subr.bf16.mxu0 %v303
    %568 = vmatpush1.bf16.msra.mxu0 %v302
    %569 = vmatprep.subr.bf16.mxu0 %v285
    %570 = vmatpush1.bf16.msra.mxu0 %v284
    %571 = vmatprep.subr.bf16.mxu0 0
    %572 = vmatpush2.bf16.msra.mxu0 0
    %573 = vmatprep.subr.bf16.mxu0 0
    %574 = vmatpush2.bf16.msra.mxu0 0
    %575 = vmatprep.subr.bf16.mxu0 0
    %576 = vmatpush2.bf16.msra.mxu0 0
    %577 = vmatprep.subr.bf16.mxu0 0
    %578 = vmatpush2.bf16.msra.mxu0 0
    %579 = vmatprep.subr.bf16.mxu0 0
    %580 = vmatpush2.bf16.msra.mxu0 0
    %581 = vmatprep.subr.bf16.mxu0 0
    %582 = vmatpush2.bf16.msra.mxu0 0
    %583 = vmatprep.subr.bf16.mxu0 0
    %584 = vmatpush2.bf16.msra.mxu0 0
    %585 = vmatprep.subr.bf16.mxu0 0
    %586 = vmatpush2.bf16.msra.mxu0 0
    %587 = vmatprep.mubr.bf16.mxu0 0
    %588 = vmatmul.mubr.bf16.gmra.mxu0 %v348
    %v589 = vpop.f32.mrf.mxu0
    %v590 = vadd.f32 %v119, %v589
    %v591 = vpop.f32.mrf.mxu0
    %v592 = vadd.f32 %v123, %v591
    %v593 = vpop.f32.mrf.mxu0
    %v594 = vpop.f32.mrf.mxu0
    %595 = vdwg.mxu0
    %596 = vmatprep.subr.bf16.mxu0 0
    %597 = vmatpush1.bf16.msra.mxu0 0
    %598 = vmatprep.subr.bf16.mxu0 0
    %599 = vmatpush1.bf16.msra.mxu0 0
    %600 = vmatprep.subr.bf16.mxu0 0
    %601 = vmatpush1.bf16.msra.mxu0 0
    %602 = vmatprep.subr.bf16.mxu0 0
    %603 = vmatpush1.bf16.msra.mxu0 0
    %604 = vmatprep.subr.bf16.mxu0 0
    %605 = vmatpush1.bf16.msra.mxu0 0
    %606 = vmatprep.subr.bf16.mxu0 0
    %607 = vmatpush1.bf16.msra.mxu0 0
    %608 = vmatprep.subr.bf16.mxu0 %v305
    %609 = vmatpush1.bf16.msra.mxu0 %v304
    %610 = vmatprep.subr.bf16.mxu0 %v287
    %611 = vmatpush1.bf16.msra.mxu0 %v286
    %612 = vmatprep.subr.bf16.mxu0 0
    %613 = vmatpush2.bf16.msra.mxu0 0
    %614 = vmatprep.subr.bf16.mxu0 0
    %615 = vmatpush2.bf16.msra.mxu0 0
    %616 = vmatprep.subr.bf16.mxu0 0
    %617 = vmatpush2.bf16.msra.mxu0 0
    %618 = vmatprep.subr.bf16.mxu0 0
    %619 = vmatpush2.bf16.msra.mxu0 0
    %620 = vmatprep.subr.bf16.mxu0 0
    %621 = vmatpush2.bf16.msra.mxu0 0
    %622 = vmatprep.subr.bf16.mxu0 0
    %623 = vmatpush2.bf16.msra.mxu0 0
    %624 = vmatprep.subr.bf16.mxu0 0
    %625 = vmatpush2.bf16.msra.mxu0 0
    %626 = vmatprep.subr.bf16.mxu0 0
    %627 = vmatpush2.bf16.msra.mxu0 0
    %628 = vmatprep.mubr.bf16.mxu0 0
    %629 = vmatmul.mubr.bf16.gmra.mxu0 %v348
    %v630 = vpop.f32.mrf.mxu0
    %v631 = vadd.f32 %v127, %v630
    %v632 = vpop.f32.mrf.mxu0
    %v633 = vadd.f32 %v131, %v632
    %v634 = vpop.f32.mrf.mxu0
    %v635 = vpop.f32.mrf.mxu0
    %636 = vdwg.mxu0
    %637 = vmatprep.subr.bf16.mxu0 0
    %638 = vmatpush1.bf16.msra.mxu0 0
    %639 = vmatprep.subr.bf16.mxu0 0
    %640 = vmatpush1.bf16.msra.mxu0 0
    %641 = vmatprep.subr.bf16.mxu0 0
    %642 = vmatpush1.bf16.msra.mxu0 0
    %643 = vmatprep.subr.bf16.mxu0 0
    %644 = vmatpush1.bf16.msra.mxu0 0
    %645 = vmatprep.subr.bf16.mxu0 0
    %646 = vmatpush1.bf16.msra.mxu0 0
    %647 = vmatprep.subr.bf16.mxu0 0
    %648 = vmatpush1.bf16.msra.mxu0 0
    %649 = vmatprep.subr.bf16.mxu0 %v307
    %650 = vmatpush1.bf16.msra.mxu0 %v306
    %651 = vmatprep.subr.bf16.mxu0 %v289
    %652 = vmatpush1.bf16.msra.mxu0 %v288
    %653 = vmatprep.subr.bf16.mxu0 0
    %654 = vmatpush2.bf16.msra.mxu0 0
    %655 = vmatprep.subr.bf16.mxu0 0
    %656 = vmatpush2.bf16.msra.mxu0 0
    %657 = vmatprep.subr.bf16.mxu0 0
    %658 = vmatpush2.bf16.msra.mxu0 0
    %659 = vmatprep.subr.bf16.mxu0 0
    %660 = vmatpush2.bf16.msra.mxu0 0
    %661 = vmatprep.subr.bf16.mxu0 0
    %662 = vmatpush2.bf16.msra.mxu0 0
    %663 = vmatprep.subr.bf16.mxu0 0
    %664 = vmatpush2.bf16.msra.mxu0 0
    %665 = vmatprep.subr.bf16.mxu0 0
    %666 = vmatpush2.bf16.msra.mxu0 0
    %667 = vmatprep.subr.bf16.mxu0 0
    %668 = vmatpush2.bf16.msra.mxu0 0
    %669 = vmatprep.mubr.bf16.mxu0 0
    %670 = vmatmul.mubr.bf16.gmra.mxu0 %v348
    %v671 = vpop.f32.mrf.mxu0
    %v672 = vadd.f32 %v135, %v671
    %v673 = vpop.f32.mrf.mxu0
    %v674 = vadd.f32 %v139, %v673
    %v675 = vpop.f32.mrf.mxu0
    %v676 = vpop.f32.mrf.mxu0
    %677 = vdwg.mxu0
    %678 = vmatprep.subr.bf16.mxu0 0
    %679 = vmatpush1.bf16.msra.mxu0 0
    %680 = vmatprep.subr.bf16.mxu0 0
    %681 = vmatpush1.bf16.msra.mxu0 0
    %682 = vmatprep.subr.bf16.mxu0 0
    %683 = vmatpush1.bf16.msra.mxu0 0
    %684 = vmatprep.subr.bf16.mxu0 0
    %685 = vmatpush1.bf16.msra.mxu0 0
    %686 = vmatprep.subr.bf16.mxu0 0
    %687 = vmatpush1.bf16.msra.mxu0 0
    %688 = vmatprep.subr.bf16.mxu0 0
    %689 = vmatpush1.bf16.msra.mxu0 0
    %690 = vmatprep.subr.bf16.mxu0 %v309
    %691 = vmatpush1.bf16.msra.mxu0 %v308
    %692 = vmatprep.subr.bf16.mxu0 %v291
    %693 = vmatpush1.bf16.msra.mxu0 %v290
    %694 = vmatprep.subr.bf16.mxu0 0
    %695 = vmatpush2.bf16.msra.mxu0 0
    %696 = vmatprep.subr.bf16.mxu0 0
    %697 = vmatpush2.bf16.msra.mxu0 0
    %698 = vmatprep.subr.bf16.mxu0 0
    %699 = vmatpush2.bf16.msra.mxu0 0
    %700 = vmatprep.subr.bf16.mxu0 0
    %701 = vmatpush2.bf16.msra.mxu0 0
    %702 = vmatprep.subr.bf16.mxu0 0
    %703 = vmatpush2.bf16.msra.mxu0 0
    %704 = vmatprep.subr.bf16.mxu0 0
    %705 = vmatpush2.bf16.msra.mxu0 0
    %706 = vmatprep.subr.bf16.mxu0 0
    %707 = vmatpush2.bf16.msra.mxu0 0
    %708 = vmatprep.subr.bf16.mxu0 0
    %709 = vmatpush2.bf16.msra.mxu0 0
    %710 = vmatprep.mubr.bf16.mxu0 0
    %711 = vmatmul.mubr.bf16.gmra.mxu0 %v348
    %v712 = vpop.f32.mrf.mxu0
    %v713 = vadd.f32 %v143, %v712
    %v714 = vpop.f32.mrf.mxu0
    %v715 = vadd.f32 %v147, %v714
    %v716 = vpop.f32.mrf.mxu0
    %v717 = vpop.f32.mrf.mxu0
    %718 = vdwg.mxu0
    %v719 = vmax.f32 %v385, 0.0
    %v720 = vmax.f32 %v387, 0.0
    %v721 = vmax.f32 %v426, 0.0
    %v722 = vmax.f32 %v428, 0.0
    %v723 = vmax.f32 %v467, 0.0
    %v724 = vmax.f32 %v469, 0.0
    %v725 = vmax.f32 %v508, 0.0
    %v726 = vmax.f32 %v510, 0.0
    %v727 = vmax.f32 %v549, 0.0
    %v728 = vmax.f32 %v551, 0.0
    %v729 = vmax.f32 %v590, 0.0
    %v730 = vmax.f32 %v592, 0.0
    %v731 = vmax.f32 %v631, 0.0
    %v732 = vmax.f32 %v633, 0.0
    %v733 = vmax.f32 %v672, 0.0
    %v734 = vmax.f32 %v674, 0.0
    %v735 = vmax.f32 %v713, 0.0
    %v736 = vmax.f32 %v715, 0.0
    %v737 = vpack.c.bf16 %v719, %v719
    %v738 = vpack.c.bf16 %v720, %v720
    %v739 = vpack.c.bf16 %v721, %v721
    %v740 = vpack.c.bf16 %v722, %v722
    %v741 = vpack.c.bf16 %v723, %v723
    %v742 = vpack.c.bf16 %v724, %v724
    %v743 = vpack.c.bf16 %v725, %v725
    %v744 = vpack.c.bf16 %v726, %v726
    %v745 = vpack.c.bf16 %v727, %v727
    %v746 = vpack.c.bf16 %v728, %v728
    %v747 = vpack.c.bf16 %v729, %v729
    %v748 = vpack.c.bf16 %v730, %v730
    %v749 = vpack.c.bf16 %v731, %v731
    %v750 = vpack.c.bf16 %v732, %v732
    %v751 = vpack.c.bf16 %v733, %v733
    %v752 = vpack.c.bf16 %v734, %v734
    %v753 = vpack.c.bf16 %v735, %v735
    %v754 = vpack.c.bf16 %v736, %v736
    %v773 = vunpack.c.l.b16 %v737
    %v774 = vunpack.c.l.b16 %v738
    %v775 = vunpack.c.l.b16 %v739
    %v776 = vunpack.c.l.b16 %v740
    %v777 = vunpack.c.l.b16 %v741
    %v778 = vunpack.c.l.b16 %v742
    %v779 = vunpack.c.l.b16 %v743
    %v780 = vunpack.c.l.b16 %v744
    %v781 = vunpack.c.l.b16 %v745
    %v782 = vunpack.c.l.b16 %v746
    %v783 = vunpack.c.l.b16 %v747
    %v784 = vunpack.c.l.b16 %v748
    %v785 = vunpack.c.l.b16 %v749
    %v786 = vunpack.c.l.b16 %v750
    %v787 = vunpack.c.l.b16 %v751
    %v788 = vunpack.c.l.b16 %v752
    %v789 = vunpack.c.l.b16 %v753
    %v790 = vunpack.c.l.b16 %v754
    %v791 = vpack.c.b16 %v774, %v773
    %v792 = vpack.c.b16 %v776, %v775
    %v793 = vpack.c.b16 %v778, %v777
    %v794 = vpack.c.b16 %v780, %v779
    %v795 = vpack.c.b16 %v782, %v781
    %v796 = vpack.c.b16 %v784, %v783
    %v797 = vpack.c.b16 %v786, %v785
    %v798 = vpack.c.b16 %v788, %v787
    %v799 = vpack.c.b16 %v790, %v789
    %809 = vst [vmem:[%s4] sm:$0xff] %v791
    %810 = vst [vmem:[%s4 + $0x8] sm:$0xff] %v792
    %811 = vst [vmem:[%s4 + $0x10] sm:$0xff] %v793
    %812 = vst [vmem:[%s4 + $0x18] sm:$0xff] %v794
    %813 = vst [vmem:[%s4 + $0x20] sm:$0xff] %v795
    %814 = vst [vmem:[%s4 + $0x28] sm:$0xff] %v796
    %815 = vst [vmem:[%s4 + $0x30] sm:$0xff] %v797
    %816 = vst [vmem:[%s4 + $0x38] sm:$0xff] %v798
    %817 = vst [vmem:[%s4 + $0x40] sm:$0xff] %v799
    // Predicated region
    $region22: #{decoder_forward.4} parent=1 // pred_check
      _
    $region23: #{decoder_forward.4} parent=1 // pred_check_branch
      %819 = sbr.rel (0) target = $region25
    $region24: #{decoder_forward.4} parent=1 // pred_region
      _
    $region25: #{decoder_forward.4} parent=1 // pred_fallthru
      _
    // Predicated region
    $region26: #{decoder_forward.4} parent=1 // pred_check
      _
    $region27: #{decoder_forward.4} parent=1 // pred_check_branch
      %821 = sbr.rel (0) target = $region29
    $region28: #{decoder_forward.4} parent=1 // pred_region
      _
    $region29: #{decoder_forward.4} parent=1 // pred_fallthru
      _
    %822 = vsyncpa [#allocation3], 1

// kernel: decoder_forward.6
$region0: #{decoder_forward.6}
  #allocation0 [shape = 'u32[]', space=smem, size = 0x4, offset = 0x4, fixed_abs, tag = 'smem constant byte address 0x4 - core index']
  #allocation1 [shape = 'u32[144,128]{1,0:T(1,128)}', space=vmem, size = 0x12000, scoped, tag = 'internal scratch']
  %s0 = inlined_call_operand.vmem [shape: bf16[288,32], index: 0, kind: input, shape index: {}]
  %s1 = inlined_call_operand.vmem [shape: f32[1,32], index: 1, kind: input, shape index: {}]
  %s2 = inlined_call_operand.vmem [shape: bf16[32,36], index: 2, kind: input, shape index: {}]
  %s3 = inlined_call_operand.vmem [shape: f32[1,36], index: 3, kind: input, shape index: {}]
  %s4 = inlined_call_operand.vmem [shape: bf16[288,36], index: 4, kind: output, shape index: {}]
  %s5 = sld [smem:[#allocation0]]
  $region26: #{decoder_forward.6} parent=0
    _
  %s7 = ssub.s32 1, %s5
  %s8 = scalar_select 0, %s7, %s5
  // Predicated region
  $region2: #{decoder_forward.6} parent=0 // pred_check
    _
  $region3: #{decoder_forward.6} parent=0 // pred_check_branch
    %10 = sbr.rel (0) target = $region5
  $region4: #{decoder_forward.6} parent=0 // pred_region
    _
  $region5: #{decoder_forward.6} parent=0 // pred_fallthru
    _
  // Predicated region
  $region6: #{decoder_forward.6} parent=0 // pred_check
    _
  $region7: #{decoder_forward.6} parent=0 // pred_check_branch
    %12 = sbr.rel (0) target = $region9
  $region8: #{decoder_forward.6} parent=0 // pred_region
    _
  $region9: #{decoder_forward.6} parent=0 // pred_fallthru
    _
  // Predicated region
  $region10: #{decoder_forward.6} parent=0 // pred_check
    _
  $region11: #{decoder_forward.6} parent=0 // pred_check_branch
    %14 = sbr.rel (0) target = $region13
  $region12: #{decoder_forward.6} parent=0 // pred_region
    _
  $region13: #{decoder_forward.6} parent=0 // pred_fallthru
    _
  // Predicated region
  $region14: #{decoder_forward.6} parent=0 // pred_check
    _
  $region15: #{decoder_forward.6} parent=0 // pred_check_branch
    %16 = sbr.rel (0) target = $region17
  $region16: #{decoder_forward.6} parent=0 // pred_region
    _
  $region17: #{decoder_forward.6} parent=0 // pred_fallthru
    _
  %v18 = vld [vmem:[%s0] sm:$0xf]
  %v19 = vld [vmem:[%s0 + $0x4] sm:$0xf]
  %v20 = vld [vmem:[%s0 + $0x8] sm:$0xf]
  %v21 = vld [vmem:[%s0 + $0xc] sm:$0xf]
  %v22 = vld [vmem:[%s0 + $0x10] sm:$0xf]
  %v23 = vld [vmem:[%s0 + $0x14] sm:$0xf]
  %v24 = vld [vmem:[%s0 + $0x18] sm:$0xf]
  %v25 = vld [vmem:[%s0 + $0x1c] sm:$0xf]
  %v26 = vld [vmem:[%s0 + $0x20] sm:$0xf]
  %v27 = vld [vmem:[%s0 + $0x24] sm:$0xf]
  %v28 = vld [vmem:[%s0 + $0x28] sm:$0xf]
  %v29 = vld [vmem:[%s0 + $0x2c] sm:$0xf]
  %v30 = vld [vmem:[%s0 + $0x30] sm:$0xf]
  %v31 = vld [vmem:[%s0 + $0x34] sm:$0xf]
  %v32 = vld [vmem:[%s0 + $0x38] sm:$0xf]
  %v33 = vld [vmem:[%s0 + $0x3c] sm:$0xf]
  %v34 = vld [vmem:[%s0 + $0x40] sm:$0xf]
  %v35 = vld [vmem:[%s0 + $0x44] sm:$0xf]
  %v36 = vld [vmem:[%s0 + $0x48] sm:$0xf]
  %v37 = vld [vmem:[%s0 + $0x4c] sm:$0xf]
  %v38 = vld [vmem:[%s0 + $0x50] sm:$0xf]
  %v39 = vld [vmem:[%s0 + $0x54] sm:$0xf]
  %v40 = vld [vmem:[%s0 + $0x58] sm:$0xf]
  %v41 = vld [vmem:[%s0 + $0x5c] sm:$0xf]
  %v42 = vld [vmem:[%s0 + $0x60] sm:$0xf]
  %v43 = vld [vmem:[%s0 + $0x64] sm:$0xf]
  %v44 = vld [vmem:[%s0 + $0x68] sm:$0xf]
  %v45 = vld [vmem:[%s0 + $0x6c] sm:$0xf]
  %v46 = vld [vmem:[%s0 + $0x70] sm:$0xf]
  %v47 = vld [vmem:[%s0 + $0x74] sm:$0xf]
  %v48 = vld [vmem:[%s0 + $0x78] sm:$0xf]
  %v49 = vld [vmem:[%s0 + $0x7c] sm:$0xf]
  %v50 = vld [vmem:[%s0 + $0x80] sm:$0xf]
  %v51 = vld [vmem:[%s0 + $0x84] sm:$0xf]
  %v52 = vld [vmem:[%s0 + $0x88] sm:$0xf]
  %v53 = vld [vmem:[%s0 + $0x8c] sm:$0xf]
  %v54 = vunpack.c.l.bf16 %v18
  %v55 = vunpack.c.l.bf16 %v19
  %v56 = vunpack.c.l.bf16 %v20
  %v57 = vunpack.c.l.bf16 %v21
  %v58 = vunpack.c.l.bf16 %v22
  %v59 = vunpack.c.l.bf16 %v23
  %v60 = vunpack.c.l.bf16 %v24
  %v61 = vunpack.c.l.bf16 %v25
  %v62 = vunpack.c.l.bf16 %v26
  %v63 = vunpack.c.l.bf16 %v27
  %v64 = vunpack.c.l.bf16 %v28
  %v65 = vunpack.c.l.bf16 %v29
  %v66 = vunpack.c.l.bf16 %v30
  %v67 = vunpack.c.l.bf16 %v31
  %v68 = vunpack.c.l.bf16 %v32
  %v69 = vunpack.c.l.bf16 %v33
  %v70 = vunpack.c.l.bf16 %v34
  %v71 = vunpack.c.l.bf16 %v35
  %v72 = vunpack.c.l.bf16 %v36
  %v73 = vunpack.c.l.bf16 %v37
  %v74 = vunpack.c.l.bf16 %v38
  %v75 = vunpack.c.l.bf16 %v39
  %v76 = vunpack.c.l.bf16 %v40
  %v77 = vunpack.c.l.bf16 %v41
  %v78 = vunpack.c.l.bf16 %v42
  %v79 = vunpack.c.l.bf16 %v43
  %v80 = vunpack.c.l.bf16 %v44
  %v81 = vunpack.c.l.bf16 %v45
  %v82 = vunpack.c.l.bf16 %v46
  %v83 = vunpack.c.l.bf16 %v47
  %v84 = vunpack.c.l.bf16 %v48
  %v85 = vunpack.c.l.bf16 %v49
  %v86 = vunpack.c.l.bf16 %v50
  %v87 = vunpack.c.l.bf16 %v51
  %v88 = vunpack.c.l.bf16 %v52
  %v89 = vunpack.c.l.bf16 %v53
  %v90 = vld [vmem:[%s1] sm:$0x1]
  %v92 = vlaneseq
  %v93 = vshrl.u32 %v92, 7
  %v94 = vsub.s32 0, %v93
  %v95 = vrot.slane %v90, %v94
  %v97 = vadd.f32 %v54, %v95
  %v98 = vadd.f32 %v55, %v95
  %v99 = vadd.f32 %v56, %v95
  %v100 = vadd.f32 %v57, %v95
  %v101 = vadd.f32 %v58, %v95
  %v102 = vadd.f32 %v59, %v95
  %v103 = vadd.f32 %v60, %v95
  %v104 = vadd.f32 %v61, %v95
  %v105 = vadd.f32 %v62, %v95
  %v106 = vadd.f32 %v63, %v95
  %v107 = vadd.f32 %v64, %v95
  %v108 = vadd.f32 %v65, %v95
  %v109 = vadd.f32 %v66, %v95
  %v110 = vadd.f32 %v67, %v95
  %v111 = vadd.f32 %v68, %v95
  %v112 = vadd.f32 %v69, %v95
  %v113 = vadd.f32 %v70, %v95
  %v114 = vadd.f32 %v71, %v95
  %v115 = vadd.f32 %v72, %v95
  %v116 = vadd.f32 %v73, %v95
  %v117 = vadd.f32 %v74, %v95
  %v118 = vadd.f32 %v75, %v95
  %v119 = vadd.f32 %v76, %v95
  %v120 = vadd.f32 %v77, %v95
  %v121 = vadd.f32 %v78, %v95
  %v122 = vadd.f32 %v79, %v95
  %v123 = vadd.f32 %v80, %v95
  %v124 = vadd.f32 %v81, %v95
  %v125 = vadd.f32 %v82, %v95
  %v126 = vadd.f32 %v83, %v95
  %v127 = vadd.f32 %v84, %v95
  %v128 = vadd.f32 %v85, %v95
  %v129 = vadd.f32 %v86, %v95
  %v130 = vadd.f32 %v87, %v95
  %v131 = vadd.f32 %v88, %v95
  %v132 = vadd.f32 %v89, %v95
  %v133 = vmax.f32 %v97, 0.0
  %v134 = vmax.f32 %v98, 0.0
  %v135 = vmax.f32 %v99, 0.0
  %v136 = vmax.f32 %v100, 0.0
  %v137 = vmax.f32 %v101, 0.0
  %v138 = vmax.f32 %v102, 0.0
  %v139 = vmax.f32 %v103, 0.0
  %v140 = vmax.f32 %v104, 0.0
  %v141 = vmax.f32 %v105, 0.0
  %v142 = vmax.f32 %v106, 0.0
  %v143 = vmax.f32 %v107, 0.0
  %v144 = vmax.f32 %v108, 0.0
  %v145 = vmax.f32 %v109, 0.0
  %v146 = vmax.f32 %v110, 0.0
  %v147 = vmax.f32 %v111, 0.0
  %v148 = vmax.f32 %v112, 0.0
  %v149 = vmax.f32 %v113, 0.0
  %v150 = vmax.f32 %v114, 0.0
  %v151 = vmax.f32 %v115, 0.0
  %v152 = vmax.f32 %v116, 0.0
  %v153 = vmax.f32 %v117, 0.0
  %v154 = vmax.f32 %v118, 0.0
  %v155 = vmax.f32 %v119, 0.0
  %v156 = vmax.f32 %v120, 0.0
  %v157 = vmax.f32 %v121, 0.0
  %v158 = vmax.f32 %v122, 0.0
  %v159 = vmax.f32 %v123, 0.0
  %v160 = vmax.f32 %v124, 0.0
  %v161 = vmax.f32 %v125, 0.0
  %v162 = vmax.f32 %v126, 0.0
  %v163 = vmax.f32 %v127, 0.0
  %v164 = vmax.f32 %v128, 0.0
  %v165 = vmax.f32 %v129, 0.0
  %v166 = vmax.f32 %v130, 0.0
  %v167 = vmax.f32 %v131, 0.0
  %v168 = vmax.f32 %v132, 0.0
  %v169 = vpack.c.bf16 %v134, %v133
  %v170 = vpack.c.bf16 %v136, %v135
  %v171 = vpack.c.bf16 %v138, %v137
  %v172 = vpack.c.bf16 %v140, %v139
  %v173 = vpack.c.bf16 %v142, %v141
  %v174 = vpack.c.bf16 %v144, %v143
  %v175 = vpack.c.bf16 %v146, %v145
  %v176 = vpack.c.bf16 %v148, %v147
  %v177 = vpack.c.bf16 %v150, %v149
  %v178 = vpack.c.bf16 %v152, %v151
  %v179 = vpack.c.bf16 %v154, %v153
  %v180 = vpack.c.bf16 %v156, %v155
  %v181 = vpack.c.bf16 %v158, %v157
  %v182 = vpack.c.bf16 %v160, %v159
  %v183 = vpack.c.bf16 %v162, %v161
  %v184 = vpack.c.bf16 %v164, %v163
  %v185 = vpack.c.bf16 %v166, %v165
  %v186 = vpack.c.bf16 %v168, %v167
  %v187 = vld [vmem:[%s2] sm:$0xf]
  %v188 = vld [vmem:[%s2 + $0x4] sm:$0xf]
  %v189 = vld [vmem:[%s2 + $0x8] sm:$0xf]
  %v190 = vld [vmem:[%s2 + $0xc] sm:$0xf]
  %v191 = vld [vmem:[%s3] sm:$0x1]
  %v193 = vlaneseq
  %v194 = vshrl.u32 %v193, 7
  %v195 = vsub.s32 0, %v194
  %v196 = vrot.slane %v191, %v195
  %v202 = vunpack.c.l.b16 %v187
  %v203 = vunpack.c.l.b16 %v188
  %v204 = vunpack.c.l.b16 %v189
  %v205 = vunpack.c.l.b16 %v190
  %v206 = vpack.c.b16 %v203, %v202
  %v207 = vpack.c.b16 %v205, %v204
  %vm210 = vcmask 261120
  %v212 = vsel %vm210, %v169, 0
  %v215 = vsel %vm210, %v170, 0
  %v218 = vsel %vm210, %v171, 0
  %v221 = vsel %vm210, %v172, 0
  %v224 = vsel %vm210, %v173, 0
  %v227 = vsel %vm210, %v174, 0
  %v230 = vsel %vm210, %v175, 0
  %v233 = vsel %vm210, %v176, 0
  %v236 = vsel %vm210, %v177, 0
  %v239 = vsel %vm210, %v178, 0
  %v242 = vsel %vm210, %v179, 0
  %v245 = vsel %vm210, %v180, 0
  %v248 = vsel %vm210, %v181, 0
  %v251 = vsel %vm210, %v182, 0
  %v254 = vsel %vm210, %v183, 0
  %v257 = vsel %vm210, %v184, 0
  %v260 = vsel %vm210, %v185, 0
  %v263 = vsel %vm210, %v186, 0
  %265 = vmatprep.subr.bf16.mxu0 0
  %266 = vmatpush1.bf16.msra.mxu0 0
  %267 = vmatprep.subr.bf16.mxu0 0
  %268 = vmatpush1.bf16.msra.mxu0 0
  %269 = vmatprep.subr.bf16.mxu0 0
  %270 = vmatpush1.bf16.msra.mxu0 0
  %271 = vmatprep.subr.bf16.mxu0 0
  %272 = vmatpush1.bf16.msra.mxu0 0
  %273 = vmatprep.subr.bf16.mxu0 0
  %274 = vmatpush1.bf16.msra.mxu0 0
  %275 = vmatprep.subr.bf16.mxu0 0
  %276 = vmatpush1.bf16.msra.mxu0 0
  %277 = vmatprep.subr.bf16.mxu0 0
  %278 = vmatpush1.bf16.msra.mxu0 %v207
  %279 = vmatprep.subr.bf16.mxu0 0
  %280 = vmatpush1.bf16.msra.mxu0 %v206
  %281 = vmatprep.subr.bf16.mxu0 0
  %282 = vmatpush2.bf16.msra.mxu0 0
  %283 = vmatprep.subr.bf16.mxu0 0
  %284 = vmatpush2.bf16.msra.mxu0 0
  %285 = vmatprep.subr.bf16.mxu0 0
  %286 = vmatpush2.bf16.msra.mxu0 0
  %287 = vmatprep.subr.bf16.mxu0 0
  %288 = vmatpush2.bf16.msra.mxu0 0
  %289 = vmatprep.subr.bf16.mxu0 0
  %290 = vmatpush2.bf16.msra.mxu0 0
  %291 = vmatprep.subr.bf16.mxu0 0
  %292 = vmatpush2.bf16.msra.mxu0 0
  %293 = vmatprep.subr.bf16.mxu0 0
  %294 = vmatpush2.bf16.msra.mxu0 0
  %295 = vmatprep.subr.bf16.mxu0 0
  %296 = vmatpush2.bf16.msra.mxu0 0
  %297 = vmatprep.mubr.bf16.mxu0 0
  %298 = vmatmul.mubr.bf16.gmra.mxu0 %v212
  %v299 = vpop.f32.mrf.mxu0
  %v300 = vadd.f32 %v196, %v299
  %v301 = vpop.f32.mrf.mxu0
  %v302 = vpop.f32.mrf.mxu0
  %v303 = vadd.f32 %v196, %v302
  %v304 = vpop.f32.mrf.mxu0
  %305 = vmatprep.mubr.bf16.mxu0 0
  %306 = vmatmul.mubr.bf16.gmra.mxu0 %v215
  %v307 = vpop.f32.mrf.mxu0
  %v308 = vadd.f32 %v196, %v307
  %v309 = vpop.f32.mrf.mxu0
  %v310 = vpop.f32.mrf.mxu0
  %v311 = vadd.f32 %v196, %v310
  %v312 = vpop.f32.mrf.mxu0
  %313 = vmatprep.mubr.bf16.mxu0 0
  %314 = vmatmul.mubr.bf16.gmra.mxu0 %v218
  %v315 = vpop.f32.mrf.mxu0
  %v316 = vadd.f32 %v196, %v315
  %v317 = vpop.f32.mrf.mxu0
  %v318 = vpop.f32.mrf.mxu0
  %v319 = vadd.f32 %v196, %v318
  %v320 = vpop.f32.mrf.mxu0
  %321 = vmatprep.mubr.bf16.mxu0 0
  %322 = vmatmul.mubr.bf16.gmra.mxu0 %v221
  %v323 = vpop.f32.mrf.mxu0
  %v324 = vadd.f32 %v196, %v323
  %v325 = vpop.f32.mrf.mxu0
  %v326 = vpop.f32.mrf.mxu0
  %v327 = vadd.f32 %v196, %v326
  %v328 = vpop.f32.mrf.mxu0
  %329 = vmatprep.mubr.bf16.mxu0 0
  %330 = vmatmul.mubr.bf16.gmra.mxu0 %v224
  %v331 = vpop.f32.mrf.mxu0
  %v332 = vadd.f32 %v196, %v331
  %v333 = vpop.f32.mrf.mxu0
  %v334 = vpop.f32.mrf.mxu0
  %v335 = vadd.f32 %v196, %v334
  %v336 = vpop.f32.mrf.mxu0
  %337 = vmatprep.mubr.bf16.mxu0 0
  %338 = vmatmul.mubr.bf16.gmra.mxu0 %v227
  %v339 = vpop.f32.mrf.mxu0
  %v340 = vadd.f32 %v196, %v339
  %v341 = vpop.f32.mrf.mxu0
  %v342 = vpop.f32.mrf.mxu0
  %v343 = vadd.f32 %v196, %v342
  %v344 = vpop.f32.mrf.mxu0
  %345 = vmatprep.mubr.bf16.mxu0 0
  %346 = vmatmul.mubr.bf16.gmra.mxu0 %v230
  %v347 = vpop.f32.mrf.mxu0
  %v348 = vadd.f32 %v196, %v347
  %v349 = vpop.f32.mrf.mxu0
  %v350 = vpop.f32.mrf.mxu0
  %v351 = vadd.f32 %v196, %v350
  %v352 = vpop.f32.mrf.mxu0
  %353 = vmatprep.mubr.bf16.mxu0 0
  %354 = vmatmul.mubr.bf16.gmra.mxu0 %v233
  %v355 = vpop.f32.mrf.mxu0
  %v356 = vadd.f32 %v196, %v355
  %v357 = vpop.f32.mrf.mxu0
  %v358 = vpop.f32.mrf.mxu0
  %v359 = vadd.f32 %v196, %v358
  %v360 = vpop.f32.mrf.mxu0
  %361 = vmatprep.mubr.bf16.mxu0 0
  %362 = vmatmul.mubr.bf16.gmra.mxu0 %v236
  %v363 = vpop.f32.mrf.mxu0
  %v364 = vadd.f32 %v196, %v363
  %v365 = vpop.f32.mrf.mxu0
  %v366 = vpop.f32.mrf.mxu0
  %v367 = vadd.f32 %v196, %v366
  %v368 = vpop.f32.mrf.mxu0
  %369 = vmatprep.mubr.bf16.mxu0 0
  %370 = vmatmul.mubr.bf16.gmra.mxu0 %v239
  %v371 = vpop.f32.mrf.mxu0
  %v372 = vadd.f32 %v196, %v371
  %v373 = vpop.f32.mrf.mxu0
  %v374 = vpop.f32.mrf.mxu0
  %v375 = vadd.f32 %v196, %v374
  %v376 = vpop.f32.mrf.mxu0
  %377 = vmatprep.mubr.bf16.mxu0 0
  %378 = vmatmul.mubr.bf16.gmra.mxu0 %v242
  %v379 = vpop.f32.mrf.mxu0
  %v380 = vadd.f32 %v196, %v379
  %v381 = vpop.f32.mrf.mxu0
  %v382 = vpop.f32.mrf.mxu0
  %v383 = vadd.f32 %v196, %v382
  %v384 = vpop.f32.mrf.mxu0
  %385 = vmatprep.mubr.bf16.mxu0 0
  %386 = vmatmul.mubr.bf16.gmra.mxu0 %v245
  %v387 = vpop.f32.mrf.mxu0
  %v388 = vadd.f32 %v196, %v387
  %v389 = vpop.f32.mrf.mxu0
  %v390 = vpop.f32.mrf.mxu0
  %v391 = vadd.f32 %v196, %v390
  %v392 = vpop.f32.mrf.mxu0
  %393 = vmatprep.mubr.bf16.mxu0 0
  %394 = vmatmul.mubr.bf16.gmra.mxu0 %v248
  %v395 = vpop.f32.mrf.mxu0
  %v396 = vadd.f32 %v196, %v395
  %v397 = vpop.f32.mrf.mxu0
  %v398 = vpop.f32.mrf.mxu0
  %v399 = vadd.f32 %v196, %v398
  %v400 = vpop.f32.mrf.mxu0
  %401 = vmatprep.mubr.bf16.mxu0 0
  %402 = vmatmul.mubr.bf16.gmra.mxu0 %v251
  %v403 = vpop.f32.mrf.mxu0
  %v404 = vadd.f32 %v196, %v403
  %v405 = vpop.f32.mrf.mxu0
  %v406 = vpop.f32.mrf.mxu0
  %v407 = vadd.f32 %v196, %v406
  %v408 = vpop.f32.mrf.mxu0
  %409 = vmatprep.mubr.bf16.mxu0 0
  %410 = vmatmul.mubr.bf16.gmra.mxu0 %v254
  %v411 = vpop.f32.mrf.mxu0
  %v412 = vadd.f32 %v196, %v411
  %v413 = vpop.f32.mrf.mxu0
  %v414 = vpop.f32.mrf.mxu0
  %v415 = vadd.f32 %v196, %v414
  %v416 = vpop.f32.mrf.mxu0
  %417 = vmatprep.mubr.bf16.mxu0 0
  %418 = vmatmul.mubr.bf16.gmra.mxu0 %v257
  %v419 = vpop.f32.mrf.mxu0
  %v420 = vadd.f32 %v196, %v419
  %v421 = vpop.f32.mrf.mxu0
  %v422 = vpop.f32.mrf.mxu0
  %v423 = vadd.f32 %v196, %v422
  %v424 = vpop.f32.mrf.mxu0
  %425 = vmatprep.mubr.bf16.mxu0 0
  %426 = vmatmul.mubr.bf16.gmra.mxu0 %v260
  %v427 = vpop.f32.mrf.mxu0
  %v428 = vadd.f32 %v196, %v427
  %v429 = vpop.f32.mrf.mxu0
  %v430 = vpop.f32.mrf.mxu0
  %v431 = vadd.f32 %v196, %v430
  %v432 = vpop.f32.mrf.mxu0
  %433 = vmatprep.mubr.bf16.mxu0 0
  %434 = vmatmul.mubr.bf16.gmra.mxu0 %v263
  %v435 = vpop.f32.mrf.mxu0
  %v436 = vadd.f32 %v196, %v435
  %v437 = vpop.f32.mrf.mxu0
  %v438 = vpop.f32.mrf.mxu0
  %v439 = vadd.f32 %v196, %v438
  %v440 = vpop.f32.mrf.mxu0
  %441 = vdwg.mxu0
  %v442 = vpack.c.bf16 %v303, %v300
  %v443 = vpack.c.bf16 %v311, %v308
  %v444 = vpack.c.bf16 %v319, %v316
  %v445 = vpack.c.bf16 %v327, %v324
  %v446 = vpack.c.bf16 %v335, %v332
  %v447 = vpack.c.bf16 %v343, %v340
  %v448 = vpack.c.bf16 %v351, %v348
  %v449 = vpack.c.bf16 %v359, %v356
  %v450 = vpack.c.bf16 %v367, %v364
  %v451 = vpack.c.bf16 %v375, %v372
  %v452 = vpack.c.bf16 %v383, %v380
  %v453 = vpack.c.bf16 %v391, %v388
  %v454 = vpack.c.bf16 %v399, %v396
  %v455 = vpack.c.bf16 %v407, %v404
  %v456 = vpack.c.bf16 %v415, %v412
  %v457 = vpack.c.bf16 %v423, %v420
  %v458 = vpack.c.bf16 %v431, %v428
  %v459 = vpack.c.bf16 %v439, %v436
  %v478 = vunpack.c.l.b16 %v442
  %v479 = vunpack.c.h.b16 %v442
  %v480 = vunpack.c.l.b16 %v443
  %v481 = vunpack.c.h.b16 %v443
  %v482 = vunpack.c.l.b16 %v444
  %v483 = vunpack.c.h.b16 %v444
  %v484 = vunpack.c.l.b16 %v445
  %v485 = vunpack.c.h.b16 %v445
  %v486 = vunpack.c.l.b16 %v446
  %v487 = vunpack.c.h.b16 %v446
  %v488 = vunpack.c.l.b16 %v447
  %v489 = vunpack.c.h.b16 %v447
  %v490 = vunpack.c.l.b16 %v448
  %v491 = vunpack.c.h.b16 %v448
  %v492 = vunpack.c.l.b16 %v449
  %v493 = vunpack.c.h.b16 %v449
  %v494 = vunpack.c.l.b16 %v450
  %v495 = vunpack.c.h.b16 %v450
  %v496 = vunpack.c.l.b16 %v451
  %v497 = vunpack.c.h.b16 %v451
  %v498 = vunpack.c.l.b16 %v452
  %v499 = vunpack.c.h.b16 %v452
  %v500 = vunpack.c.l.b16 %v453
  %v501 = vunpack.c.h.b16 %v453
  %v502 = vunpack.c.l.b16 %v454
  %v503 = vunpack.c.h.b16 %v454
  %v504 = vunpack.c.l.b16 %v455
  %v505 = vunpack.c.h.b16 %v455
  %v506 = vunpack.c.l.b16 %v456
  %v507 = vunpack.c.h.b16 %v456
  %v508 = vunpack.c.l.b16 %v457
  %v509 = vunpack.c.h.b16 %v457
  %v510 = vunpack.c.l.b16 %v458
  %v511 = vunpack.c.h.b16 %v458
  %v512 = vunpack.c.l.b16 %v459
  %v513 = vunpack.c.h.b16 %v459
  %v514 = vpack.c.b16 %v478, %v478
  %v515 = vpack.c.b16 %v479, %v479
  %v516 = vpack.c.b16 %v480, %v480
  %v517 = vpack.c.b16 %v481, %v481
  %v518 = vpack.c.b16 %v482, %v482
  %v519 = vpack.c.b16 %v483, %v483
  %v520 = vpack.c.b16 %v484, %v484
  %v521 = vpack.c.b16 %v485, %v485
  %v522 = vpack.c.b16 %v486, %v486
  %v523 = vpack.c.b16 %v487, %v487
  %v524 = vpack.c.b16 %v488, %v488
  %v525 = vpack.c.b16 %v489, %v489
  %v526 = vpack.c.b16 %v490, %v490
  %v527 = vpack.c.b16 %v491, %v491
  %v528 = vpack.c.b16 %v492, %v492
  %v529 = vpack.c.b16 %v493, %v493
  %v530 = vpack.c.b16 %v494, %v494
  %v531 = vpack.c.b16 %v495, %v495
  %v532 = vpack.c.b16 %v496, %v496
  %v533 = vpack.c.b16 %v497, %v497
  %v534 = vpack.c.b16 %v498, %v498
  %v535 = vpack.c.b16 %v499, %v499
  %v536 = vpack.c.b16 %v500, %v500
  %v537 = vpack.c.b16 %v501, %v501
  %v538 = vpack.c.b16 %v502, %v502
  %v539 = vpack.c.b16 %v503, %v503
  %v540 = vpack.c.b16 %v504, %v504
  %v541 = vpack.c.b16 %v505, %v505
  %v542 = vpack.c.b16 %v506, %v506
  %v543 = vpack.c.b16 %v507, %v507
  %v544 = vpack.c.b16 %v508, %v508
  %v545 = vpack.c.b16 %v509, %v509
  %v546 = vpack.c.b16 %v510, %v510
  %v547 = vpack.c.b16 %v511, %v511
  %v548 = vpack.c.b16 %v512, %v512
  %v549 = vpack.c.b16 %v513, %v513
  %vm586 = vcmask 289792
  %587 = vst.msk [vmem:[%s4] sm:$0xf] %vm586, %v514
  %588 = vst.msk [vmem:[%s4 + $0x4] sm:$0xf] %vm586, %v515
  %589 = vst.msk [vmem:[%s4 + $0x8] sm:$0xf] %vm586, %v516
  %590 = vst.msk [vmem:[%s4 + $0xc] sm:$0xf] %vm586, %v517
  %591 = vst.msk [vmem:[%s4 + $0x10] sm:$0xf] %vm586, %v518
  %592 = vst.msk [vmem:[%s4 + $0x14] sm:$0xf] %vm586, %v519
  %593 = vst.msk [vmem:[%s4 + $0x18] sm:$0xf] %vm586, %v520
  %594 = vst.msk [vmem:[%s4 + $0x1c] sm:$0xf] %vm586, %v521
  %595 = vst.msk [vmem:[%s4 + $0x20] sm:$0xf] %vm586, %v522
  %596 = vst.msk [vmem:[%s4 + $0x24] sm:$0xf] %vm586, %v523
  %597 = vst.msk [vmem:[%s4 + $0x28] sm:$0xf] %vm586, %v524
  %598 = vst.msk [vmem:[%s4 + $0x2c] sm:$0xf] %vm586, %v525
  %599 = vst.msk [vmem:[%s4 + $0x30] sm:$0xf] %vm586, %v526
  %600 = vst.msk [vmem:[%s4 + $0x34] sm:$0xf] %vm586, %v527
  %601 = vst.msk [vmem:[%s4 + $0x38] sm:$0xf] %vm586, %v528
  %602 = vst.msk [vmem:[%s4 + $0x3c] sm:$0xf] %vm586, %v529
  %603 = vst.msk [vmem:[%s4 + $0x40] sm:$0xf] %vm586, %v530
  %604 = vst.msk [vmem:[%s4 + $0x44] sm:$0xf] %vm586, %v531
  %605 = vst.msk [vmem:[%s4 + $0x48] sm:$0xf] %vm586, %v532
  %606 = vst.msk [vmem:[%s4 + $0x4c] sm:$0xf] %vm586, %v533
  %607 = vst.msk [vmem:[%s4 + $0x50] sm:$0xf] %vm586, %v534
  %608 = vst.msk [vmem:[%s4 + $0x54] sm:$0xf] %vm586, %v535
  %609 = vst.msk [vmem:[%s4 + $0x58] sm:$0xf] %vm586, %v536
  %610 = vst.msk [vmem:[%s4 + $0x5c] sm:$0xf] %vm586, %v537
  %611 = vst.msk [vmem:[%s4 + $0x60] sm:$0xf] %vm586, %v538
  %612 = vst.msk [vmem:[%s4 + $0x64] sm:$0xf] %vm586, %v539
  %613 = vst.msk [vmem:[%s4 + $0x68] sm:$0xf] %vm586, %v540
  %614 = vst.msk [vmem:[%s4 + $0x6c] sm:$0xf] %vm586, %v541
  %615 = vst.msk [vmem:[%s4 + $0x70] sm:$0xf] %vm586, %v542
  %616 = vst.msk [vmem:[%s4 + $0x74] sm:$0xf] %vm586, %v543
  %617 = vst.msk [vmem:[%s4 + $0x78] sm:$0xf] %vm586, %v544
  %618 = vst.msk [vmem:[%s4 + $0x7c] sm:$0xf] %vm586, %v545
  %619 = vst.msk [vmem:[%s4 + $0x80] sm:$0xf] %vm586, %v546
  %620 = vst.msk [vmem:[%s4 + $0x84] sm:$0xf] %vm586, %v547
  %621 = vst.msk [vmem:[%s4 + $0x88] sm:$0xf] %vm586, %v548
  %622 = vst.msk [vmem:[%s4 + $0x8c] sm:$0xf] %vm586, %v549
  // Predicated region
  $region18: #{decoder_forward.6} parent=0 // pred_check
    _
  $region19: #{decoder_forward.6} parent=0 // pred_check_branch
    %624 = sbr.rel (0) target = $region21
  $region20: #{decoder_forward.6} parent=0 // pred_region
    _
  $region21: #{decoder_forward.6} parent=0 // pred_fallthru
    _
  // Predicated region
  $region22: #{decoder_forward.6} parent=0 // pred_check
    _
  $region23: #{decoder_forward.6} parent=0 // pred_check_branch
    %626 = sbr.rel (0) target = $region25
  $region24: #{decoder_forward.6} parent=0 // pred_region
    _
  $region25: #{decoder_forward.6} parent=0 // pred_fallthru
    _

// kernel: decoder_forward.7
$region0: #{decoder_forward.7}
  #allocation0 [shape = 'u32[]', space=smem, size = 0x4, offset = 0x4, fixed_abs, tag = 'smem constant byte address 0x4 - core index']
  #allocation1 [shape = 'u32[144,128]{1,0:T(1,128)}', space=vmem, size = 0x12000, scoped, tag = 'internal scratch']
  #allocation2 [shape = 'f32[1,1]{1,0:T(1,128)S(1)}', space=vmem, size = 0x200, scoped, tag = 'scoped memory for decoder_forward.7']
  %s0 = inlined_call_operand.vmem [shape: bf16[8,784], index: 0, kind: input, shape index: {}]
  %s1 = inlined_call_operand.<no memory space> [shape: f32[1,1], index: 1, kind: input, shape index: {}]
  %s2 = inlined_call_operand.vmem [shape: f32[8,784], index: 2, kind: output, shape index: {}]
  %s3 = sld [smem:[#allocation0]]
  $region18: #{decoder_forward.7} parent=0
    _
  %s5 = ssub.s32 1, %s3
  %s6 = scalar_select 0, %s5, %s3
  %v7 = vstv %s1
  %8 = vst [vmem:[#allocation2] sm:$0x1] %v7
  // Predicated region
  $region2: #{decoder_forward.7} parent=0 // pred_check
    _
  $region3: #{decoder_forward.7} parent=0 // pred_check_branch
    %10 = sbr.rel (0) target = $region5
  $region4: #{decoder_forward.7} parent=0 // pred_region
    _
  $region5: #{decoder_forward.7} parent=0 // pred_fallthru
    _
  // Predicated region
  $region6: #{decoder_forward.7} parent=0 // pred_check
    _
  $region7: #{decoder_forward.7} parent=0 // pred_check_branch
    %12 = sbr.rel (0) target = $region9
  $region8: #{decoder_forward.7} parent=0 // pred_region
    _
  $region9: #{decoder_forward.7} parent=0 // pred_fallthru
    _
  %v13 = vld [vmem:[%s0] sm:$0xff]
  %v14 = vld [vmem:[%s0 + $0x8] sm:$0xff]
  %v15 = vld [vmem:[%s0 + $0x10] sm:$0xff]
  %v16 = vld [vmem:[%s0 + $0x18] sm:$0xf]
  %v17 = vunpack.c.l.bf16 %v13
  %v18 = vunpack.c.h.bf16 %v13
  %v19 = vunpack.c.l.bf16 %v14
  %v20 = vunpack.c.h.bf16 %v14
  %v21 = vunpack.c.l.bf16 %v15
  %v22 = vunpack.c.h.bf16 %v15
  %v23 = vunpack.c.l.bf16 %v16
  %v24 = vld [vmem:[#allocation2] sm:$0x1]
  %v26 = vlaneseq
  %v27 = vshrl.u32 %v26, 7
  %v28 = vsub.s32 0, %v27
  %v29 = vrot.slane %v24, %v28
  %30 = vset.pattern.permute.xlu0 0
  %31 = vperm.xlu0 %30, %v29
  %v32 = vpop.permute.xlu0 %31
  %v34 = vadd.f32 %v17, %v32
  %v35 = vadd.f32 %v18, %v32
  %v36 = vadd.f32 %v19, %v32
  %v37 = vadd.f32 %v20, %v32
  %v38 = vadd.f32 %v21, %v32
  %v39 = vadd.f32 %v22, %v32
  %v40 = vadd.f32 %v23, %v32
  %v41 = vsub.f32 0.0, %v34
  %v42 = vsub.f32 0.0, %v35
  %v43 = vsub.f32 0.0, %v36
  %v44 = vsub.f32 0.0, %v37
  %v45 = vsub.f32 0.0, %v38
  %v46 = vsub.f32 0.0, %v39
  %v47 = vsub.f32 0.0, %v40
  %v48 = vmul.f32 %v41, 1.442695
  %v49 = vpow.pop %v48
  %v50 = vmul.f32 %v42, 1.442695
  %v51 = vpow.pop %v50
  %v52 = vmul.f32 %v43, 1.442695
  %v53 = vpow.pop %v52
  %v54 = vmul.f32 %v44, 1.442695
  %v55 = vpow.pop %v54
  %v56 = vmul.f32 %v45, 1.442695
  %v57 = vpow.pop %v56
  %v58 = vmul.f32 %v46, 1.442695
  %v59 = vpow.pop %v58
  %v60 = vmul.f32 %v47, 1.442695
  %v61 = vpow.pop %v60
  %v62 = vadd.f32 %v49, 1.0
  %v63 = vadd.f32 %v51, 1.0
  %v64 = vadd.f32 %v53, 1.0
  %v65 = vadd.f32 %v55, 1.0
  %v66 = vadd.f32 %v57, 1.0
  %v67 = vadd.f32 %v59, 1.0
  %v68 = vadd.f32 %v61, 1.0
  %v69 = vrcp.pop %v62
  %v70 = vmul.f32 1.0, %v69
  %v71 = vrcp.pop %v63
  %v72 = vmul.f32 1.0, %v71
  %v73 = vrcp.pop %v64
  %v74 = vmul.f32 1.0, %v73
  %v75 = vrcp.pop %v65
  %v76 = vmul.f32 1.0, %v75
  %v77 = vrcp.pop %v66
  %v78 = vmul.f32 1.0, %v77
  %v79 = vrcp.pop %v67
  %v80 = vmul.f32 1.0, %v79
  %v81 = vrcp.pop %v68
  %v82 = vmul.f32 1.0, %v81
  %83 = vst [vmem:[%s2] sm:$0xff] %v70
  %84 = vst [vmem:[%s2 + $0x8] sm:$0xff] %v72
  %85 = vst [vmem:[%s2 + $0x10] sm:$0xff] %v74
  %86 = vst [vmem:[%s2 + $0x18] sm:$0xff] %v76
  %87 = vst [vmem:[%s2 + $0x20] sm:$0xff] %v78
  %88 = vst [vmem:[%s2 + $0x28] sm:$0xff] %v80
  %vm89 = vcmask 130048
  %90 = vst.msk [vmem:[%s2 + $0x30] sm:$0xff] %vm89, %v82
  // Predicated region
  $region10: #{decoder_forward.7} parent=0 // pred_check
    _
  $region11: #{decoder_forward.7} parent=0 // pred_check_branch
    %92 = sbr.rel (0) target = $region13
  $region12: #{decoder_forward.7} parent=0 // pred_region
    _
  $region13: #{decoder_forward.7} parent=0 // pred_fallthru
    _
  // Predicated region
  $region14: #{decoder_forward.7} parent=0 // pred_check
    _
  $region15: #{decoder_forward.7} parent=0 // pred_check_branch
    %94 = sbr.rel (0) target = $region17
  $region16: #{decoder_forward.7} parent=0 // pred_region
    _
  $region17: #{decoder_forward.7} parent=0 // pred_fallthru
    _

</llo_original>
